<compile_context>
chip_gen: v7x
topology: tpu7x:2x2x1
jax: 0.10.0
libtpu: 0.0.40
codegen_flags: <defaults>
</compile_context>

<pallas_src>
import functools

import jax
import jax.numpy as jnp
from jax.experimental import pallas as pl
from jax.experimental.pallas import tpu as pltpu


def _pick_tiling(batch, max_tile_rows):
    """Pick (tile_rows, grid_len).

    tile_rows is either a multiple of 8 or equal to the full batch dim, so the
    Mosaic sublane constraint is always satisfied without padding the input.
    """
    if batch <= 8 or (batch % 8 != 0 and batch <= max_tile_rows):
        return batch, 1                           # one full-array block
    if batch % 16 == 0 and batch <= max_tile_rows:
        return batch // 2, 2                      # even 2-step grid (v7x: both TCs busy)
    if batch <= max_tile_rows:
        return batch, 1                           # multiple of 8, single step
    tile = max_tile_rows                          # multiple of 8; final block may be partial
    return tile, pl.cdiv(batch, tile)


def _mlp_kernel(*refs, num_layers):
    """refs = (h_ref, W0, b0, W1, b1, ..., W_{L-1}, b_{L-1}, out_ref).

    W_l: f32 (in, out), VMEM-resident.  b_l: f32 (1, out).  h/out: f32 tiles.
    """
    h_ref = refs[0]
    out_ref = refs[-1]
    param_refs = refs[1:-1]

    h = h_ref[...]                                    # (tile_rows, gdim) f32
    for layer in range(num_layers):
        w = param_refs[2 * layer][...]                # f32 (in, out)
        b = param_refs[2 * layer + 1][...]            # f32 (1, out)
        h = jnp.dot(h, w, preferred_element_type=jnp.float32) + b
        if layer < num_layers - 1:
            # TODO(synk): F.dropout is identity at inference (training=False); not implemented.
            h = jnp.maximum(h, 0.0)                   # ReLU on hidden layers only
    out_ref[...] = h.astype(out_ref.dtype)


def get_acc_forward(h, params, *, max_tile_rows=4096):
    """h: (batch, gdim) float32.  params: list of (W_t (in,out) f32, b (1,out) f32)."""
    num_layers = len(params)
    batch, gdim = h.shape
    dim_target = params[-1][0].shape[1]

    tile_rows, grid_len = _pick_tiling(batch, max_tile_rows)

    flat = []
    for w, b in params:
        flat += [w.astype(jnp.float32), b.astype(jnp.float32)]

    # Weights/biases: constant block index across the grid -> VMEM-resident, no re-DMA.
    def resident_spec(arr):
        nd = arr.ndim
        return pl.BlockSpec(arr.shape, lambda i, nd=nd: (0,) * nd)

    in_specs = [pl.BlockSpec((tile_rows, gdim), lambda i: (i, 0))]      # streamed activations
    in_specs += [resident_spec(a) for a in flat]
    # Natural-width output: last dim equals full array dim (no 128-lane pad, no slice copy).
    out_spec = pl.BlockSpec((tile_rows, dim_target), lambda i: (i, 0))
    out_shape = jax.ShapeDtypeStruct((batch, dim_target), jnp.float32)

    return pl.pallas_call(
        functools.partial(_mlp_kernel, num_layers=num_layers),
        grid=(grid_len,),
        in_specs=in_specs,
        out_specs=out_spec,
        out_shape=out_shape,
        compiler_params=pltpu.CompilerParams(
            dimension_semantics=("parallel",)),  # v7x: shard the batch axis over both TCs
    )(h.astype(jnp.float32), *flat)


def init_params(key, gdim, dim_target, num_layers):
    """Deterministic synthetic parameters matching nn.Linear shapes in GetAcc.__init__."""
    dims_in = [gdim // (2 ** n) for n in range(num_layers - 1)]
    dims_out = [gdim // (2 ** (n + 1)) for n in range(num_layers - 1)]
    dims_in.append(gdim // (2 ** (num_layers - 1)))
    dims_out.append(dim_target)

    params = []
    for d_in, d_out in zip(dims_in, dims_out):
        key, kw, kb = jax.random.split(key, 3)
        # PyTorch stores W as (out, in); keep the transposed (in, out) form for the kernel.
        w_t = jax.random.normal(kw, (d_in, d_out), dtype=jnp.float32) * 0.1
        b = jax.random.normal(kb, (1, d_out), dtype=jnp.float32) * 0.1
        params.append((w_t, b))
    return params


def reference_forward(h, params):
    """Pure-JAX f32 reference of GetAcc.forward (eval mode)."""
    num_layers = len(params)
    for layer, (w, b) in enumerate(params):
        z = jnp.dot(h, w, preferred_element_type=jnp.float32) + b
        h = jnp.maximum(z, 0.0) if layer < num_layers - 1 else z
    return h


if __name__ == "__main__":
    # Module-consistent dims: gdim=32, 3 layers -> 32 -> 16 -> 8 -> dim_target=8
    gdim = 32
    dim_target = 8
    num_layers = 3

    key = jax.random.PRNGKey(0)
    key, kh = jax.random.split(key)
    params = init_params(key, gdim, dim_target, num_layers)

    # Batched case: 1024 rows -> even 2-step grid of 512-row tiles (both TCs on v7x).
    h_big = jax.random.normal(kh, (1024, gdim), dtype=jnp.float32)
    out_big = jax.block_until_ready(get_acc_forward(h_big, params))
    ref_big = reference_forward(h_big, params)
    assert out_big.shape == (1024, dim_target), out_big.shape
    assert jnp.allclose(out_big, ref_big, atol=1e-3, rtol=1e-3), "mismatch (batched) vs f32 reference"

    # Tiny / ragged case: batch not a multiple of 8 -> single full-array block, no padding.
    h_small = h_big[:7]
    out_small = jax.block_until_ready(get_acc_forward(h_small, params))
    assert out_small.shape == (7, dim_target), out_small.shape
    assert jnp.allclose(out_small, ref_big[:7], atol=1e-3, rtol=1e-3), "mismatch (small) vs f32 reference"

    print("KERNEL_OK")
</pallas_src>

<mosaic_0001>
module attributes {stable_mosaic.version = 11 : i64} {
  func.func @_mlp_kernel(%arg0: i32, %arg1: memref<512x32xf32, #tpu.memory_space<vmem>>, %arg2: memref<32x16xf32, #tpu.memory_space<vmem>>, %arg3: memref<1x16xf32, #tpu.memory_space<vmem>>, %arg4: memref<16x8xf32, #tpu.memory_space<vmem>>, %arg5: memref<1x8xf32, #tpu.memory_space<vmem>>, %arg6: memref<8x8xf32, #tpu.memory_space<vmem>>, %arg7: memref<1x8xf32, #tpu.memory_space<vmem>>, %arg8: memref<512x8xf32, #tpu.memory_space<vmem>>) attributes {dimension_semantics = [#tpu.dimension_semantics<parallel>], iteration_bounds = array<i64: 2>, scalar_prefetch = 0 : i64, scratch_operands = 0 : i64, tpu.core_type = #tpu.core_type<tc>, window_params = [{transform_indices = @transform_0, window_bounds = array<i64: 512, 32>}, {pipeline_mode = #tpu.pipeline_mode<synchronous>, transform_indices = @transform_1, window_bounds = array<i64: 32, 16>}, {pipeline_mode = #tpu.pipeline_mode<synchronous>, transform_indices = @transform_2, window_bounds = array<i64: 1, 16>}, {pipeline_mode = #tpu.pipeline_mode<synchronous>, transform_indices = @transform_3, window_bounds = array<i64: 16, 8>}, {pipeline_mode = #tpu.pipeline_mode<synchronous>, transform_indices = @transform_4, window_bounds = array<i64: 1, 8>}, {pipeline_mode = #tpu.pipeline_mode<synchronous>, transform_indices = @transform_5, window_bounds = array<i64: 8, 8>}, {pipeline_mode = #tpu.pipeline_mode<synchronous>, transform_indices = @transform_6, window_bounds = array<i64: 1, 8>}, {transform_indices = @transform_7, window_bounds = array<i64: 512, 8>}]} {
    %c0 = arith.constant 0 : index
    %c0_0 = arith.constant 0 : index
    %0 = vector.load %arg1[%c0, %c0_0] : memref<512x32xf32, #tpu.memory_space<vmem>>, vector<512x32xf32>
    %c0_1 = arith.constant 0 : index
    %c0_2 = arith.constant 0 : index
    %1 = vector.load %arg2[%c0_1, %c0_2] : memref<32x16xf32, #tpu.memory_space<vmem>>, vector<32x16xf32>
    %c0_3 = arith.constant 0 : index
    %c0_4 = arith.constant 0 : index
    %2 = vector.load %arg3[%c0_3, %c0_4] : memref<1x16xf32, #tpu.memory_space<vmem>>, vector<1x16xf32>
    %cst = arith.constant dense<0.000000e+00> : vector<512x16xf32>
    %3 = tpu.matmul %0, %1, %cst {dimension_numbers = #tpu.dot_dimension_numbers<[1], [0], [0], [1], [0, 0, 1, 1], [], []>} : vector<512x32xf32>, vector<32x16xf32>, vector<512x16xf32> -> vector<512x16xf32>
    %4 = vector.broadcast %2 : vector<1x16xf32> to vector<512x16xf32>
    %5 = arith.addf %3, %4 : vector<512x16xf32>
    %cst_5 = arith.constant 0.000000e+00 : f32
    %6 = vector.broadcast %cst_5 : f32 to vector<512x16xf32>
    %7 = arith.maximumf %5, %6 : vector<512x16xf32>
    %c0_6 = arith.constant 0 : index
    %c0_7 = arith.constant 0 : index
    %8 = vector.load %arg4[%c0_6, %c0_7] : memref<16x8xf32, #tpu.memory_space<vmem>>, vector<16x8xf32>
    %c0_8 = arith.constant 0 : index
    %c0_9 = arith.constant 0 : index
    %9 = vector.load %arg5[%c0_8, %c0_9] : memref<1x8xf32, #tpu.memory_space<vmem>>, vector<1x8xf32>
    %cst_10 = arith.constant dense<0.000000e+00> : vector<512x8xf32>
    %10 = tpu.matmul %7, %8, %cst_10 {dimension_numbers = #tpu.dot_dimension_numbers<[1], [0], [0], [1], [0, 0, 1, 1], [], []>} : vector<512x16xf32>, vector<16x8xf32>, vector<512x8xf32> -> vector<512x8xf32>
    %11 = vector.broadcast %9 : vector<1x8xf32> to vector<512x8xf32>
    %12 = arith.addf %10, %11 : vector<512x8xf32>
    %cst_11 = arith.constant 0.000000e+00 : f32
    %13 = vector.broadcast %cst_11 : f32 to vector<512x8xf32>
    %14 = arith.maximumf %12, %13 : vector<512x8xf32>
    %c0_12 = arith.constant 0 : index
    %c0_13 = arith.constant 0 : index
    %15 = vector.load %arg6[%c0_12, %c0_13] : memref<8x8xf32, #tpu.memory_space<vmem>>, vector<8x8xf32>
    %c0_14 = arith.constant 0 : index
    %c0_15 = arith.constant 0 : index
    %16 = vector.load %arg7[%c0_14, %c0_15] : memref<1x8xf32, #tpu.memory_space<vmem>>, vector<1x8xf32>
    %cst_16 = arith.constant dense<0.000000e+00> : vector<512x8xf32>
    %17 = tpu.matmul %14, %15, %cst_16 {dimension_numbers = #tpu.dot_dimension_numbers<[1], [0], [0], [1], [0, 0, 1, 1], [], []>} : vector<512x8xf32>, vector<8x8xf32>, vector<512x8xf32> -> vector<512x8xf32>
    %18 = vector.broadcast %16 : vector<1x8xf32> to vector<512x8xf32>
    %19 = arith.addf %17, %18 : vector<512x8xf32>
    %c0_17 = arith.constant 0 : index
    %c0_18 = arith.constant 0 : index
    %20 = vector.load %arg8[%c0_17, %c0_18] : memref<512x8xf32, #tpu.memory_space<vmem>>, vector<512x8xf32>
    tpu.vector_store %arg8[%c0_17, %c0_18], %19 {strides = array<i32>} : memref<512x8xf32, #tpu.memory_space<vmem>>, vector<512x8xf32>,
    return
  }
  func.func @transform_0(%arg0: i32) -> (i32, i32) {
    %c0_i32 = arith.constant 0 : i32
    %c0_i32_0 = arith.constant 0 : i32
    return %arg0, %c0_i32 : i32, i32
  }
  func.func @transform_1(%arg0: i32) -> (i32, i32) {
    %c0_i32 = arith.constant 0 : i32
    %c0_i32_0 = arith.constant 0 : i32
    %c0_i32_1 = arith.constant 0 : i32
    return %c0_i32, %c0_i32_0 : i32, i32
  }
  func.func @transform_2(%arg0: i32) -> (i32, i32) {
    %c0_i32 = arith.constant 0 : i32
    %c0_i32_0 = arith.constant 0 : i32
    %c0_i32_1 = arith.constant 0 : i32
    return %c0_i32, %c0_i32_0 : i32, i32
  }
  func.func @transform_3(%arg0: i32) -> (i32, i32) {
    %c0_i32 = arith.constant 0 : i32
    %c0_i32_0 = arith.constant 0 : i32
    %c0_i32_1 = arith.constant 0 : i32
    return %c0_i32, %c0_i32_0 : i32, i32
  }
  func.func @transform_4(%arg0: i32) -> (i32, i32) {
    %c0_i32 = arith.constant 0 : i32
    %c0_i32_0 = arith.constant 0 : i32
    %c0_i32_1 = arith.constant 0 : i32
    return %c0_i32, %c0_i32_0 : i32, i32
  }
  func.func @transform_5(%arg0: i32) -> (i32, i32) {
    %c0_i32 = arith.constant 0 : i32
    %c0_i32_0 = arith.constant 0 : i32
    %c0_i32_1 = arith.constant 0 : i32
    return %c0_i32, %c0_i32_0 : i32, i32
  }
  func.func @transform_6(%arg0: i32) -> (i32, i32) {
    %c0_i32 = arith.constant 0 : i32
    %c0_i32_0 = arith.constant 0 : i32
    %c0_i32_1 = arith.constant 0 : i32
    return %c0_i32, %c0_i32_0 : i32, i32
  }
  func.func @transform_7(%arg0: i32) -> (i32, i32) {
    %c0_i32 = arith.constant 0 : i32
    %c0_i32_0 = arith.constant 0 : i32
    return %arg0, %c0_i32 : i32, i32
  }
}

</mosaic_0001>

<llo_original>
// kernel: tpu_custom_call.1
$region0: #{tpu_custom_call.1}
  #allocation0 [shape = 'u32[]', space=smem, size = 0x4, offset = 0x4, fixed_abs, tag = 'smem constant byte address 0x4 - core index']
  #allocation1 [shape = 'u32[144,128]{1,0:T(1,128)}', space=vmem, size = 0x12000, scoped, tag = 'internal scratch']
  %s0 = inlined_call_operand.vmem [shape: f32[1024,32], index: 0, kind: input, shape index: {}]
  %s1 = inlined_call_operand.vmem [shape: f32[32,16], index: 1, kind: input, shape index: {}]
  %s2 = inlined_call_operand.vmem [shape: f32[1,16], index: 2, kind: input, shape index: {}]
  %s3 = inlined_call_operand.vmem [shape: f32[16,8], index: 3, kind: input, shape index: {}]
  %s4 = inlined_call_operand.vmem [shape: f32[1,8], index: 4, kind: input, shape index: {}]
  %s5 = inlined_call_operand.vmem [shape: f32[8,8], index: 5, kind: input, shape index: {}]
  %s6 = inlined_call_operand.vmem [shape: f32[1,8], index: 6, kind: input, shape index: {}]
  %s7 = inlined_call_operand.vmem [shape: f32[1024,8], index: 7, kind: output, shape index: {}]
  %s8 = sld [smem:[#allocation0]]
  $region61: #{tpu_custom_call.1} parent=0
    _
  %s10 = ssub.s32 1, %s8
  %s11 = scalar_select 0, %s10, %s8
  loop: start=0, step=1, limit=4
  $region2: #{tpu_custom_call.1} parent=0 // loop_pre_header
    _
  $region3: #{tpu_custom_call.1} parent=0 // loop_header
    %s13 = sphi 0, %s17
    %p14 = scmp.ge.s32.totalorder %s13, 4
    %s23 = sphi 0, %s25
    %s26 = sphi 0, %s23
    %s27 = sphi 0, %s26
    %s43 = sphi 0, %s27
    %s47 = sphi 0, %s47
    %s49 = sphi 0, %s47
    %s50 = sphi 0, %s49
    %s64 = sphi 0, %s50
    %s68 = sphi 0, %s68
    %s70 = sphi 0, %s68
    %s71 = sphi 0, %s70
    %s85 = sphi 0, %s71
    %s89 = sphi 0, %s89
    %s91 = sphi 0, %s89
    %s92 = sphi 0, %s91
    %s106 = sphi 0, %s92
    %s110 = sphi 0, %s110
    %s112 = sphi 0, %s110
    %s113 = sphi 0, %s112
    %s127 = sphi 0, %s113
    %s131 = sphi 0, %s131
    %s133 = sphi 0, %s131
    %s134 = sphi 0, %s133
    %s148 = sphi 0, %s134
    %s152 = sphi 0, %s152
    %s154 = sphi 0, %s152
    %s155 = sphi 0, %s154
    %s169 = sphi 0, %s155
    %s175 = sphi 0, %s177
    %s178 = sphi 0, %s175
    %s179 = sphi 0, %s178
    %s195 = sphi 0, %s179
  $region4: #{tpu_custom_call.1} parent=0 // loop_header_branch
    %16 = sbr.rel (%p14) target = $region8
  $region5: #{tpu_custom_call.1} parent=0 // loop_body
    %s18 = ssub.s32 %s13, 1
    %s19 = ssub.s32 %s13, 2
    %s20 = sadd.s32 %s13, 1
    %s21 = ssub.s32 %s13, %s20
    %p22 = scmp.eq.s32.totalorder %s21, 0
    %s24 = sadd.s32 %s23, 1
    %s25 = scalar_select %p22, %s23, %s24
    %p28 = pneg %p22
    %p29 = scmp.eq.s32.totalorder %s13, 1
    %p30 = por %p28, %p29
    %p31 = scmp.ne.s32.totalorder %s23, %s26
    %p32 = scmp.eq.s32.totalorder %s13, 0
    %p33 = por %p31, %p32
    %p34 = scmp.ne.s32.totalorder %s23, %s26
    %p35 = scmp.eq.s32.totalorder %s18, 1
    %p36 = por %p34, %p35
    %p37 = scmp.ne.s32.totalorder %s26, %s27
    %p38 = scmp.eq.s32.totalorder %s18, 0
    %p39 = por %p37, %p38
    %p40 = scmp.ne.s32.totalorder %s26, %s27
    %p41 = scmp.eq.s32.totalorder %s19, 1
    %p42 = por %p40, %p41
    %p44 = scmp.ne.s32.totalorder %s27, %s43
    %p45 = scmp.eq.s32.totalorder %s19, 0
    %p46 = por %p44, %p45
    %s48 = sadd.s32 %s47, 1
    %p51 = scmp.eq.s32.totalorder %s13, 1
    %p52 = scmp.ne.s32.totalorder %s47, %s49
    %p53 = scmp.eq.s32.totalorder %s13, 0
    %p54 = por %p52, %p53
    %p55 = scmp.ne.s32.totalorder %s47, %s49
    %p56 = scmp.eq.s32.totalorder %s18, 1
    %p57 = por %p55, %p56
    %p58 = scmp.ne.s32.totalorder %s49, %s50
    %p59 = scmp.eq.s32.totalorder %s18, 0
    %p60 = por %p58, %p59
    %p61 = scmp.ne.s32.totalorder %s49, %s50
    %p62 = scmp.eq.s32.totalorder %s19, 1
    %p63 = por %p61, %p62
    %p65 = scmp.ne.s32.totalorder %s50, %s64
    %p66 = scmp.eq.s32.totalorder %s19, 0
    %p67 = por %p65, %p66
    %s69 = sadd.s32 %s68, 1
    %p72 = scmp.eq.s32.totalorder %s13, 1
    %p73 = scmp.ne.s32.totalorder %s68, %s70
    %p74 = scmp.eq.s32.totalorder %s13, 0
    %p75 = por %p73, %p74
    %p76 = scmp.ne.s32.totalorder %s68, %s70
    %p77 = scmp.eq.s32.totalorder %s18, 1
    %p78 = por %p76, %p77
    %p79 = scmp.ne.s32.totalorder %s70, %s71
    %p80 = scmp.eq.s32.totalorder %s18, 0
    %p81 = por %p79, %p80
    %p82 = scmp.ne.s32.totalorder %s70, %s71
    %p83 = scmp.eq.s32.totalorder %s19, 1
    %p84 = por %p82, %p83
    %p86 = scmp.ne.s32.totalorder %s71, %s85
    %p87 = scmp.eq.s32.totalorder %s19, 0
    %p88 = por %p86, %p87
    %s90 = sadd.s32 %s89, 1
    %p93 = scmp.eq.s32.totalorder %s13, 1
    %p94 = scmp.ne.s32.totalorder %s89, %s91
    %p95 = scmp.eq.s32.totalorder %s13, 0
    %p96 = por %p94, %p95
    %p97 = scmp.ne.s32.totalorder %s89, %s91
    %p98 = scmp.eq.s32.totalorder %s18, 1
    %p99 = por %p97, %p98
    %p100 = scmp.ne.s32.totalorder %s91, %s92
    %p101 = scmp.eq.s32.totalorder %s18, 0
    %p102 = por %p100, %p101
    %p103 = scmp.ne.s32.totalorder %s91, %s92
    %p104 = scmp.eq.s32.totalorder %s19, 1
    %p105 = por %p103, %p104
    %p107 = scmp.ne.s32.totalorder %s92, %s106
    %p108 = scmp.eq.s32.totalorder %s19, 0
    %p109 = por %p107, %p108
    %s111 = sadd.s32 %s110, 1
    %p114 = scmp.eq.s32.totalorder %s13, 1
    %p115 = scmp.ne.s32.totalorder %s110, %s112
    %p116 = scmp.eq.s32.totalorder %s13, 0
    %p117 = por %p115, %p116
    %p118 = scmp.ne.s32.totalorder %s110, %s112
    %p119 = scmp.eq.s32.totalorder %s18, 1
    %p120 = por %p118, %p119
    %p121 = scmp.ne.s32.totalorder %s112, %s113
    %p122 = scmp.eq.s32.totalorder %s18, 0
    %p123 = por %p121, %p122
    %p124 = scmp.ne.s32.totalorder %s112, %s113
    %p125 = scmp.eq.s32.totalorder %s19, 1
    %p126 = por %p124, %p125
    %p128 = scmp.ne.s32.totalorder %s113, %s127
    %p129 = scmp.eq.s32.totalorder %s19, 0
    %p130 = por %p128, %p129
    %s132 = sadd.s32 %s131, 1
    %p135 = scmp.eq.s32.totalorder %s13, 1
    %p136 = scmp.ne.s32.totalorder %s131, %s133
    %p137 = scmp.eq.s32.totalorder %s13, 0
    %p138 = por %p136, %p137
    %p139 = scmp.ne.s32.totalorder %s131, %s133
    %p140 = scmp.eq.s32.totalorder %s18, 1
    %p141 = por %p139, %p140
    %p142 = scmp.ne.s32.totalorder %s133, %s134
    %p143 = scmp.eq.s32.totalorder %s18, 0
    %p144 = por %p142, %p143
    %p145 = scmp.ne.s32.totalorder %s133, %s134
    %p146 = scmp.eq.s32.totalorder %s19, 1
    %p147 = por %p145, %p146
    %p149 = scmp.ne.s32.totalorder %s134, %s148
    %p150 = scmp.eq.s32.totalorder %s19, 0
    %p151 = por %p149, %p150
    %s153 = sadd.s32 %s152, 1
    %p156 = scmp.eq.s32.totalorder %s13, 1
    %p157 = scmp.ne.s32.totalorder %s152, %s154
    %p158 = scmp.eq.s32.totalorder %s13, 0
    %p159 = por %p157, %p158
    %p160 = scmp.ne.s32.totalorder %s152, %s154
    %p161 = scmp.eq.s32.totalorder %s18, 1
    %p162 = por %p160, %p161
    %p163 = scmp.ne.s32.totalorder %s154, %s155
    %p164 = scmp.eq.s32.totalorder %s18, 0
    %p165 = por %p163, %p164
    %p166 = scmp.ne.s32.totalorder %s154, %s155
    %p167 = scmp.eq.s32.totalorder %s19, 1
    %p168 = por %p166, %p167
    %p170 = scmp.ne.s32.totalorder %s155, %s169
    %p171 = scmp.eq.s32.totalorder %s19, 0
    %p172 = por %p170, %p171
    %s173 = ssub.s32 %s13, %s20
    %p174 = scmp.eq.s32.totalorder %s173, 0
    %s176 = sadd.s32 %s175, 1
    %s177 = scalar_select %p174, %s175, %s176
    %p180 = pneg %p174
    %p181 = scmp.eq.s32.totalorder %s13, 1
    %p182 = por %p180, %p181
    %p183 = scmp.ne.s32.totalorder %s175, %s178
    %p184 = scmp.eq.s32.totalorder %s13, 0
    %p185 = por %p183, %p184
    %p186 = scmp.ne.s32.totalorder %s175, %s178
    %p187 = scmp.eq.s32.totalorder %s18, 1
    %p188 = por %p186, %p187
    %p189 = scmp.ne.s32.totalorder %s178, %s179
    %p190 = scmp.eq.s32.totalorder %s18, 0
    %p191 = por %p189, %p190
    %p192 = scmp.ne.s32.totalorder %s178, %s179
    %p193 = scmp.eq.s32.totalorder %s19, 1
    %p194 = por %p192, %p193
    %p196 = scmp.ne.s32.totalorder %s179, %s195
    %p197 = scmp.eq.s32.totalorder %s19, 0
    %p198 = por %p196, %p197
    %p199 = scmp.le.s32.totalorder 1, %s13
    %p200 = scmp.lt.s32.totalorder %s13, 3
    %p201 = pnand %p199, %p200
    %p202 = pneg %p201
    // Predicated region
    $region9: #{tpu_custom_call.1} parent=5 // pred_check
      _
    $region10: #{tpu_custom_call.1} parent=5 // pred_check_branch
      %204 = sbr.rel (%p201) target = $region12
    $region11: #{tpu_custom_call.1} parent=5 // pred_region
      %s205 = ssub.s32 %s13, 1
      // Predicated region
      $region13: #{tpu_custom_call.1} parent=11 // pred_check
        %p206 = pneg %p60
      $region14: #{tpu_custom_call.1} parent=11 // pred_check_branch
        %208 = sbr.rel (%p206) target = $region16
      $region15: #{tpu_custom_call.1} parent=11 // pred_region
        _
      $region16: #{tpu_custom_call.1} parent=11 // pred_fallthru
        _
      // Predicated region
      $region17: #{tpu_custom_call.1} parent=11 // pred_check
        %p209 = pneg %p81
      $region18: #{tpu_custom_call.1} parent=11 // pred_check_branch
        %211 = sbr.rel (%p209) target = $region20
      $region19: #{tpu_custom_call.1} parent=11 // pred_region
        _
      $region20: #{tpu_custom_call.1} parent=11 // pred_fallthru
        _
      // Predicated region
      $region21: #{tpu_custom_call.1} parent=11 // pred_check
        %p212 = pneg %p102
      $region22: #{tpu_custom_call.1} parent=11 // pred_check_branch
        %214 = sbr.rel (%p212) target = $region24
      $region23: #{tpu_custom_call.1} parent=11 // pred_region
        _
      $region24: #{tpu_custom_call.1} parent=11 // pred_fallthru
        _
      // Predicated region
      $region25: #{tpu_custom_call.1} parent=11 // pred_check
        %p215 = pneg %p123
      $region26: #{tpu_custom_call.1} parent=11 // pred_check_branch
        %217 = sbr.rel (%p215) target = $region28
      $region27: #{tpu_custom_call.1} parent=11 // pred_region
        _
      $region28: #{tpu_custom_call.1} parent=11 // pred_fallthru
        _
      // Predicated region
      $region29: #{tpu_custom_call.1} parent=11 // pred_check
        %p218 = pneg %p144
      $region30: #{tpu_custom_call.1} parent=11 // pred_check_branch
        %220 = sbr.rel (%p218) target = $region32
      $region31: #{tpu_custom_call.1} parent=11 // pred_region
        _
      $region32: #{tpu_custom_call.1} parent=11 // pred_fallthru
        _
      // Predicated region
      $region33: #{tpu_custom_call.1} parent=11 // pred_check
        %p221 = pneg %p165
      $region34: #{tpu_custom_call.1} parent=11 // pred_check_branch
        %223 = sbr.rel (%p221) target = $region36
      $region35: #{tpu_custom_call.1} parent=11 // pred_region
        _
      $region36: #{tpu_custom_call.1} parent=11 // pred_fallthru
        _
    $region12: #{tpu_custom_call.1} parent=5 // pred_fallthru
      _
    %p224 = scmp.lt.s32.totalorder %s13, 2
    // Predicated region
    $region37: #{tpu_custom_call.1} parent=5 // pred_check
      %p225 = pneg %p224
    $region38: #{tpu_custom_call.1} parent=5 // pred_check_branch
      %227 = sbr.rel (%p225) target = $region40
    $region39: #{tpu_custom_call.1} parent=5 // pred_region
      // Predicated region
      $region41: #{tpu_custom_call.1} parent=39 // pred_check
        %p228 = pneg %p33
      $region42: #{tpu_custom_call.1} parent=39 // pred_check_branch
        %230 = sbr.rel (%p228) target = $region44
      $region43: #{tpu_custom_call.1} parent=39 // pred_region
        %s231 = smul.u32 64, %s13
        %p232 = scmp.lt.s32.totalorder %s231, 127
        %s233 = scalar_select %p232, %s231, 127
        %s234 = smul.addr %s233, 8
        %s235 = scalar_lea.vmem %s0, %s234
        %s236 = smul.u32 64, %s13
      $region44: #{tpu_custom_call.1} parent=39 // pred_fallthru
        _
    $region40: #{tpu_custom_call.1} parent=5 // pred_fallthru
      _
    %p237 = scmp.le.s32.totalorder 1, %s13
    %p238 = scmp.lt.s32.totalorder %s13, 3
    %p239 = pnand %p237, %p238
    %p240 = pneg %p239
    // Predicated region
    $region45: #{tpu_custom_call.1} parent=5 // pred_check
      _
    $region46: #{tpu_custom_call.1} parent=5 // pred_check_branch
      %242 = sbr.rel (%p239) target = $region48
    $region47: #{tpu_custom_call.1} parent=5 // pred_region
      %s243 = ssub.s32 %s13, 1
      %s244 = smul.u32 64, %s18
      %p245 = scmp.lt.s32.totalorder %s244, 127
      %s246 = scalar_select %p245, %s244, 127
      %s247 = smul.addr %s246, 8
      %s248 = scalar_lea.vmem %s0, %s247
      %p249 = pneg %p39
      %p250 = pneg %p36
      %p251 = pneg %p60
      %p252 = pneg %p57
      %p253 = pneg %p81
      %p254 = pneg %p78
      %p255 = pneg %p102
      %p256 = pneg %p99
      %p257 = pneg %p123
      %p258 = pneg %p120
      %p259 = pneg %p144
      %p260 = pneg %p141
      %p261 = pneg %p165
      %p262 = pneg %p162
      %p263 = pneg %p191
      %p264 = pneg %p188
      %s265 = smul.u32 64, %s18
      %p266 = scmp.lt.s32.totalorder %s265, 127
      %s267 = scalar_select %p266, %s265, 127
      %s268 = smul.addr %s267, 8
      %s269 = scalar_lea.vmem %s7, %s268
      %s270 = smul.u32 64, %s18
      %p271 = scmp.lt.s32.totalorder %s270, 127
      %s272 = scalar_select %p271, %s270, 127
      %s273 = smul.addr %s272, 8
      %s274 = scalar_lea.vmem %s0, %s273
      %s275 = smul.u32 64, %s18
      %s276 = smul.u32 64, %s18
      %p277 = scmp.lt.s32.totalorder %s276, 127
      %s278 = scalar_select %p277, %s276, 127
      %s279 = smul.addr %s278, 8
      %s280 = scalar_lea.vmem %s7, %s279
      %s281 = smul.u32 64, %s18
      %v282 = vld [vmem:[%s274] sm:$0xff]
      %v283 = vld [vmem:[%s274 + $0x8] sm:$0xff]
      %v284 = vld [vmem:[%s274 + $0x10] sm:$0xff]
      %v285 = vld [vmem:[%s274 + $0x18] sm:$0xff]
      %v286 = vld [vmem:[%s274 + $0x20] sm:$0xff]
      %v287 = vld [vmem:[%s274 + $0x28] sm:$0xff]
      %v288 = vld [vmem:[%s274 + $0x30] sm:$0xff]
      %v289 = vld [vmem:[%s274 + $0x38] sm:$0xff]
      %v290 = vld [vmem:[%s274 + $0x40] sm:$0xff]
      %v291 = vld [vmem:[%s274 + $0x48] sm:$0xff]
      %v292 = vld [vmem:[%s274 + $0x50] sm:$0xff]
      %v293 = vld [vmem:[%s274 + $0x58] sm:$0xff]
      %v294 = vld [vmem:[%s274 + $0x60] sm:$0xff]
      %v295 = vld [vmem:[%s274 + $0x68] sm:$0xff]
      %v296 = vld [vmem:[%s274 + $0x70] sm:$0xff]
      %v297 = vld [vmem:[%s274 + $0x78] sm:$0xff]
      %v298 = vld [vmem:[%s274 + $0x80] sm:$0xff]
      %v299 = vld [vmem:[%s274 + $0x88] sm:$0xff]
      %v300 = vld [vmem:[%s274 + $0x90] sm:$0xff]
      %v301 = vld [vmem:[%s274 + $0x98] sm:$0xff]
      %v302 = vld [vmem:[%s274 + $0xa0] sm:$0xff]
      %v303 = vld [vmem:[%s274 + $0xa8] sm:$0xff]
      %v304 = vld [vmem:[%s274 + $0xb0] sm:$0xff]
      %v305 = vld [vmem:[%s274 + $0xb8] sm:$0xff]
      %v306 = vld [vmem:[%s274 + $0xc0] sm:$0xff]
      %v307 = vld [vmem:[%s274 + $0xc8] sm:$0xff]
      %v308 = vld [vmem:[%s274 + $0xd0] sm:$0xff]
      %v309 = vld [vmem:[%s274 + $0xd8] sm:$0xff]
      %v310 = vld [vmem:[%s274 + $0xe0] sm:$0xff]
      %v311 = vld [vmem:[%s274 + $0xe8] sm:$0xff]
      %v312 = vld [vmem:[%s274 + $0xf0] sm:$0xff]
      %v313 = vld [vmem:[%s274 + $0xf8] sm:$0xff]
      %v314 = vld [vmem:[%s274 + $0x100] sm:$0xff]
      %v315 = vld [vmem:[%s274 + $0x108] sm:$0xff]
      %v316 = vld [vmem:[%s274 + $0x110] sm:$0xff]
      %v317 = vld [vmem:[%s274 + $0x118] sm:$0xff]
      %v318 = vld [vmem:[%s274 + $0x120] sm:$0xff]
      %v319 = vld [vmem:[%s274 + $0x128] sm:$0xff]
      %v320 = vld [vmem:[%s274 + $0x130] sm:$0xff]
      %v321 = vld [vmem:[%s274 + $0x138] sm:$0xff]
      %v322 = vld [vmem:[%s274 + $0x140] sm:$0xff]
      %v323 = vld [vmem:[%s274 + $0x148] sm:$0xff]
      %v324 = vld [vmem:[%s274 + $0x150] sm:$0xff]
      %v325 = vld [vmem:[%s274 + $0x158] sm:$0xff]
      %v326 = vld [vmem:[%s274 + $0x160] sm:$0xff]
      %v327 = vld [vmem:[%s274 + $0x168] sm:$0xff]
      %v328 = vld [vmem:[%s274 + $0x170] sm:$0xff]
      %v329 = vld [vmem:[%s274 + $0x178] sm:$0xff]
      %v330 = vld [vmem:[%s274 + $0x180] sm:$0xff]
      %v331 = vld [vmem:[%s274 + $0x188] sm:$0xff]
      %v332 = vld [vmem:[%s274 + $0x190] sm:$0xff]
      %v333 = vld [vmem:[%s274 + $0x198] sm:$0xff]
      %v334 = vld [vmem:[%s274 + $0x1a0] sm:$0xff]
      %v335 = vld [vmem:[%s274 + $0x1a8] sm:$0xff]
      %v336 = vld [vmem:[%s274 + $0x1b0] sm:$0xff]
      %v337 = vld [vmem:[%s274 + $0x1b8] sm:$0xff]
      %v338 = vld [vmem:[%s274 + $0x1c0] sm:$0xff]
      %v339 = vld [vmem:[%s274 + $0x1c8] sm:$0xff]
      %v340 = vld [vmem:[%s274 + $0x1d0] sm:$0xff]
      %v341 = vld [vmem:[%s274 + $0x1d8] sm:$0xff]
      %v342 = vld [vmem:[%s274 + $0x1e0] sm:$0xff]
      %v343 = vld [vmem:[%s274 + $0x1e8] sm:$0xff]
      %v344 = vld [vmem:[%s274 + $0x1f0] sm:$0xff]
      %v345 = vld [vmem:[%s274 + $0x1f8] sm:$0xff]
      %v346 = vld [vmem:[%s1] sm:$0xff]
      %v347 = vld [vmem:[%s1 + $0x8] sm:$0xff]
      %v348 = vld [vmem:[%s1 + $0x10] sm:$0xff]
      %v349 = vld [vmem:[%s1 + $0x18] sm:$0xff]
      %v350 = vld [vmem:[%s2] sm:$0x1]
      %v352 = vlaneseq
      %v353 = vshrl.u32 %v352, 7
      %v354 = vsub.s32 0, %v353
      %v355 = vrot.slane %v350, %v354
      %vm357 = vcmask 261120
      %v359 = vsel %vm357, %v282, 0
      %v362 = vsel %vm357, %v283, 0
      %v365 = vsel %vm357, %v284, 0
      %v368 = vsel %vm357, %v285, 0
      %v371 = vsel %vm357, %v286, 0
      %v374 = vsel %vm357, %v287, 0
      %v377 = vsel %vm357, %v288, 0
      %v380 = vsel %vm357, %v289, 0
      %v383 = vsel %vm357, %v290, 0
      %v386 = vsel %vm357, %v291, 0
      %v389 = vsel %vm357, %v292, 0
      %v392 = vsel %vm357, %v293, 0
      %v395 = vsel %vm357, %v294, 0
      %v398 = vsel %vm357, %v295, 0
      %v401 = vsel %vm357, %v296, 0
      %v404 = vsel %vm357, %v297, 0
      %v407 = vsel %vm357, %v298, 0
      %v410 = vsel %vm357, %v299, 0
      %v413 = vsel %vm357, %v300, 0
      %v416 = vsel %vm357, %v301, 0
      %v419 = vsel %vm357, %v302, 0
      %v422 = vsel %vm357, %v303, 0
      %v425 = vsel %vm357, %v304, 0
      %v428 = vsel %vm357, %v305, 0
      %v431 = vsel %vm357, %v306, 0
      %v434 = vsel %vm357, %v307, 0
      %v437 = vsel %vm357, %v308, 0
      %v440 = vsel %vm357, %v309, 0
      %v443 = vsel %vm357, %v310, 0
      %v446 = vsel %vm357, %v311, 0
      %v449 = vsel %vm357, %v312, 0
      %v452 = vsel %vm357, %v313, 0
      %v455 = vsel %vm357, %v314, 0
      %v458 = vsel %vm357, %v315, 0
      %v461 = vsel %vm357, %v316, 0
      %v464 = vsel %vm357, %v317, 0
      %v467 = vsel %vm357, %v318, 0
      %v470 = vsel %vm357, %v319, 0
      %v473 = vsel %vm357, %v320, 0
      %v476 = vsel %vm357, %v321, 0
      %v479 = vsel %vm357, %v322, 0
      %v482 = vsel %vm357, %v323, 0
      %v485 = vsel %vm357, %v324, 0
      %v488 = vsel %vm357, %v325, 0
      %v491 = vsel %vm357, %v326, 0
      %v494 = vsel %vm357, %v327, 0
      %v497 = vsel %vm357, %v328, 0
      %v500 = vsel %vm357, %v329, 0
      %v503 = vsel %vm357, %v330, 0
      %v506 = vsel %vm357, %v331, 0
      %v509 = vsel %vm357, %v332, 0
      %v512 = vsel %vm357, %v333, 0
      %v515 = vsel %vm357, %v334, 0
      %v518 = vsel %vm357, %v335, 0
      %v521 = vsel %vm357, %v336, 0
      %v524 = vsel %vm357, %v337, 0
      %v527 = vsel %vm357, %v338, 0
      %v530 = vsel %vm357, %v339, 0
      %v533 = vsel %vm357, %v340, 0
      %v536 = vsel %vm357, %v341, 0
      %v539 = vsel %vm357, %v342, 0
      %v542 = vsel %vm357, %v343, 0
      %v545 = vsel %vm357, %v344, 0
      %v548 = vsel %vm357, %v345, 0
      %550 = vmatprep.subr.mxu0 0.0
      %551 = vmatpush1.msra.mxu0 %v346
      %552 = vmatprep.subr.mxu0 0.0
      %553 = vmatpush1.msra.mxu0 %v347
      %554 = vmatprep.subr.mxu0 0.0
      %555 = vmatpush1.msra.mxu0 %v348
      %556 = vmatprep.subr.mxu0 0.0
      %557 = vmatpush1.msra.mxu0 %v349
      %558 = vmatprep.subr.mxu0 0.0
      %559 = vmatpush1.msra.mxu0 0.0
      %560 = vmatprep.subr.mxu0 0.0
      %561 = vmatpush1.msra.mxu0 0.0
      %562 = vmatprep.subr.mxu0 0.0
      %563 = vmatpush1.msra.mxu0 0.0
      %564 = vmatprep.subr.mxu0 0.0
      %565 = vmatpush1.msra.mxu0 0.0
      %566 = vmatprep.subr.mxu0 0.0
      %567 = vmatpush1.msra.mxu0 0.0
      %568 = vmatprep.subr.mxu0 0.0
      %569 = vmatpush1.msra.mxu0 0.0
      %570 = vmatprep.subr.mxu0 0.0
      %571 = vmatpush1.msra.mxu0 0.0
      %572 = vmatprep.subr.mxu0 0.0
      %573 = vmatpush1.msra.mxu0 0.0
      %574 = vmatprep.subr.mxu0 0.0
      %575 = vmatpush1.msra.mxu0 0.0
      %576 = vmatprep.subr.mxu0 0.0
      %577 = vmatpush1.msra.mxu0 0.0
      %578 = vmatprep.subr.mxu0 0.0
      %579 = vmatpush1.msra.mxu0 0.0
      %580 = vmatprep.subr.mxu0 0.0
      %581 = vmatpush1.msra.mxu0 0.0
      %582 = vmatprep.subr.mxu0 0.0
      %583 = vmatpush1.msra.mxu0 0.0
      %584 = vmatprep.subr.mxu0 0.0
      %585 = vmatpush1.msra.mxu0 0.0
      %586 = vmatprep.subr.mxu0 0.0
      %587 = vmatpush1.msra.mxu0 0.0
      %588 = vmatprep.subr.mxu0 0.0
      %589 = vmatpush1.msra.mxu0 0.0
      %590 = vmatprep.subr.mxu0 0.0
      %591 = vmatpush1.msra.mxu0 0.0
      %592 = vmatprep.subr.mxu0 0.0
      %593 = vmatpush1.msra.mxu0 0.0
      %594 = vmatprep.subr.mxu0 0.0
      %595 = vmatpush1.msra.mxu0 0.0
      %596 = vmatprep.subr.mxu0 0.0
      %597 = vmatpush1.msra.mxu0 0.0
      %598 = vmatprep.subr.mxu0 0.0
      %599 = vmatpush1.msra.mxu0 0.0
      %600 = vmatprep.subr.mxu0 0.0
      %601 = vmatpush1.msra.mxu0 0.0
      %602 = vmatprep.subr.mxu0 0.0
      %603 = vmatpush1.msra.mxu0 0.0
      %604 = vmatprep.subr.mxu0 0.0
      %605 = vmatpush1.msra.mxu0 0.0
      %606 = vmatprep.subr.mxu0 0.0
      %607 = vmatpush1.msra.mxu0 0.0
      %608 = vmatprep.subr.mxu0 0.0
      %609 = vmatpush1.msra.mxu0 0.0
      %610 = vmatprep.subr.mxu0 0.0
      %611 = vmatpush1.msra.mxu0 0.0
      %612 = vmatprep.subr.mxu0 0.0
      %613 = vmatpush1.msra.mxu0 0.0
      %614 = vmatprep.mubr.f32.mxu0 0.0
      %615 = vmatmul.mubr.f32.gmra.mrb[0].mxu0 %v359
      %v616 = vpop.f32.mrb[0].mxu0
      %v617 = vadd.f32 %v355, %v616
      %v618 = vpop.f32.mrb[0].mxu0
      %619 = vmatprep.mubr.f32.mxu0 0.0
      %620 = vmatmul.mubr.f32.gmra.mrb[0].mxu0 %v362
      %v621 = vpop.f32.mrb[0].mxu0
      %v622 = vadd.f32 %v355, %v621
      %v623 = vpop.f32.mrb[0].mxu0
      %624 = vmatprep.mubr.f32.mxu0 0.0
      %625 = vmatmul.mubr.f32.gmra.mrb[0].mxu0 %v365
      %v626 = vpop.f32.mrb[0].mxu0
      %v627 = vadd.f32 %v355, %v626
      %v628 = vpop.f32.mrb[0].mxu0
      %629 = vmatprep.mubr.f32.mxu0 0.0
      %630 = vmatmul.mubr.f32.gmra.mrb[0].mxu0 %v368
      %v631 = vpop.f32.mrb[0].mxu0
      %v632 = vadd.f32 %v355, %v631
      %v633 = vpop.f32.mrb[0].mxu0
      %634 = vmatprep.mubr.f32.mxu0 0.0
      %635 = vmatmul.mubr.f32.gmra.mrb[0].mxu0 %v371
      %v636 = vpop.f32.mrb[0].mxu0
      %v637 = vadd.f32 %v355, %v636
      %v638 = vpop.f32.mrb[0].mxu0
      %639 = vmatprep.mubr.f32.mxu0 0.0
      %640 = vmatmul.mubr.f32.gmra.mrb[0].mxu0 %v374
      %v641 = vpop.f32.mrb[0].mxu0
      %v642 = vadd.f32 %v355, %v641
      %v643 = vpop.f32.mrb[0].mxu0
      %644 = vmatprep.mubr.f32.mxu0 0.0
      %645 = vmatmul.mubr.f32.gmra.mrb[0].mxu0 %v377
      %v646 = vpop.f32.mrb[0].mxu0
      %v647 = vadd.f32 %v355, %v646
      %v648 = vpop.f32.mrb[0].mxu0
      %649 = vmatprep.mubr.f32.mxu0 0.0
      %650 = vmatmul.mubr.f32.gmra.mrb[0].mxu0 %v380
      %v651 = vpop.f32.mrb[0].mxu0
      %v652 = vadd.f32 %v355, %v651
      %v653 = vpop.f32.mrb[0].mxu0
      %654 = vmatprep.mubr.f32.mxu0 0.0
      %655 = vmatmul.mubr.f32.gmra.mrb[0].mxu0 %v383
      %v656 = vpop.f32.mrb[0].mxu0
      %v657 = vadd.f32 %v355, %v656
      %v658 = vpop.f32.mrb[0].mxu0
      %659 = vmatprep.mubr.f32.mxu0 0.0
      %660 = vmatmul.mubr.f32.gmra.mrb[0].mxu0 %v386
      %v661 = vpop.f32.mrb[0].mxu0
      %v662 = vadd.f32 %v355, %v661
      %v663 = vpop.f32.mrb[0].mxu0
      %664 = vmatprep.mubr.f32.mxu0 0.0
      %665 = vmatmul.mubr.f32.gmra.mrb[0].mxu0 %v389
      %v666 = vpop.f32.mrb[0].mxu0
      %v667 = vadd.f32 %v355, %v666
      %v668 = vpop.f32.mrb[0].mxu0
      %669 = vmatprep.mubr.f32.mxu0 0.0
      %670 = vmatmul.mubr.f32.gmra.mrb[0].mxu0 %v392
      %v671 = vpop.f32.mrb[0].mxu0
      %v672 = vadd.f32 %v355, %v671
      %v673 = vpop.f32.mrb[0].mxu0
      %674 = vmatprep.mubr.f32.mxu0 0.0
      %675 = vmatmul.mubr.f32.gmra.mrb[0].mxu0 %v395
      %v676 = vpop.f32.mrb[0].mxu0
      %v677 = vadd.f32 %v355, %v676
      %v678 = vpop.f32.mrb[0].mxu0
      %679 = vmatprep.mubr.f32.mxu0 0.0
      %680 = vmatmul.mubr.f32.gmra.mrb[0].mxu0 %v398
      %v681 = vpop.f32.mrb[0].mxu0
      %v682 = vadd.f32 %v355, %v681
      %v683 = vpop.f32.mrb[0].mxu0
      %684 = vmatprep.mubr.f32.mxu0 0.0
      %685 = vmatmul.mubr.f32.gmra.mrb[0].mxu0 %v401
      %v686 = vpop.f32.mrb[0].mxu0
      %v687 = vadd.f32 %v355, %v686
      %v688 = vpop.f32.mrb[0].mxu0
      %689 = vmatprep.mubr.f32.mxu0 0.0
      %690 = vmatmul.mubr.f32.gmra.mrb[0].mxu0 %v404
      %v691 = vpop.f32.mrb[0].mxu0
      %v692 = vadd.f32 %v355, %v691
      %v693 = vpop.f32.mrb[0].mxu0
      %694 = vmatprep.mubr.f32.mxu0 0.0
      %695 = vmatmul.mubr.f32.gmra.mrb[0].mxu0 %v407
      %v696 = vpop.f32.mrb[0].mxu0
      %v697 = vadd.f32 %v355, %v696
      %v698 = vpop.f32.mrb[0].mxu0
      %699 = vmatprep.mubr.f32.mxu0 0.0
      %700 = vmatmul.mubr.f32.gmra.mrb[0].mxu0 %v410
      %v701 = vpop.f32.mrb[0].mxu0
      %v702 = vadd.f32 %v355, %v701
      %v703 = vpop.f32.mrb[0].mxu0
      %704 = vmatprep.mubr.f32.mxu0 0.0
      %705 = vmatmul.mubr.f32.gmra.mrb[0].mxu0 %v413
      %v706 = vpop.f32.mrb[0].mxu0
      %v707 = vadd.f32 %v355, %v706
      %v708 = vpop.f32.mrb[0].mxu0
      %709 = vmatprep.mubr.f32.mxu0 0.0
      %710 = vmatmul.mubr.f32.gmra.mrb[0].mxu0 %v416
      %v711 = vpop.f32.mrb[0].mxu0
      %v712 = vadd.f32 %v355, %v711
      %v713 = vpop.f32.mrb[0].mxu0
      %714 = vmatprep.mubr.f32.mxu0 0.0
      %715 = vmatmul.mubr.f32.gmra.mrb[0].mxu0 %v419
      %v716 = vpop.f32.mrb[0].mxu0
      %v717 = vadd.f32 %v355, %v716
      %v718 = vpop.f32.mrb[0].mxu0
      %719 = vmatprep.mubr.f32.mxu0 0.0
      %720 = vmatmul.mubr.f32.gmra.mrb[0].mxu0 %v422
      %v721 = vpop.f32.mrb[0].mxu0
      %v722 = vadd.f32 %v355, %v721
      %v723 = vpop.f32.mrb[0].mxu0
      %724 = vmatprep.mubr.f32.mxu0 0.0
      %725 = vmatmul.mubr.f32.gmra.mrb[0].mxu0 %v425
      %v726 = vpop.f32.mrb[0].mxu0
      %v727 = vadd.f32 %v355, %v726
      %v728 = vpop.f32.mrb[0].mxu0
      %729 = vmatprep.mubr.f32.mxu0 0.0
      %730 = vmatmul.mubr.f32.gmra.mrb[0].mxu0 %v428
      %v731 = vpop.f32.mrb[0].mxu0
      %v732 = vadd.f32 %v355, %v731
      %v733 = vpop.f32.mrb[0].mxu0
      %734 = vmatprep.mubr.f32.mxu0 0.0
      %735 = vmatmul.mubr.f32.gmra.mrb[0].mxu0 %v431
      %v736 = vpop.f32.mrb[0].mxu0
      %v737 = vadd.f32 %v355, %v736
      %v738 = vpop.f32.mrb[0].mxu0
      %739 = vmatprep.mubr.f32.mxu0 0.0
      %740 = vmatmul.mubr.f32.gmra.mrb[0].mxu0 %v434
      %v741 = vpop.f32.mrb[0].mxu0
      %v742 = vadd.f32 %v355, %v741
      %v743 = vpop.f32.mrb[0].mxu0
      %744 = vmatprep.mubr.f32.mxu0 0.0
      %745 = vmatmul.mubr.f32.gmra.mrb[0].mxu0 %v437
      %v746 = vpop.f32.mrb[0].mxu0
      %v747 = vadd.f32 %v355, %v746
      %v748 = vpop.f32.mrb[0].mxu0
      %749 = vmatprep.mubr.f32.mxu0 0.0
      %750 = vmatmul.mubr.f32.gmra.mrb[0].mxu0 %v440
      %v751 = vpop.f32.mrb[0].mxu0
      %v752 = vadd.f32 %v355, %v751
      %v753 = vpop.f32.mrb[0].mxu0
      %754 = vmatprep.mubr.f32.mxu0 0.0
      %755 = vmatmul.mubr.f32.gmra.mrb[0].mxu0 %v443
      %v756 = vpop.f32.mrb[0].mxu0
      %v757 = vadd.f32 %v355, %v756
      %v758 = vpop.f32.mrb[0].mxu0
      %759 = vmatprep.mubr.f32.mxu0 0.0
      %760 = vmatmul.mubr.f32.gmra.mrb[0].mxu0 %v446
      %v761 = vpop.f32.mrb[0].mxu0
      %v762 = vadd.f32 %v355, %v761
      %v763 = vpop.f32.mrb[0].mxu0
      %764 = vmatprep.mubr.f32.mxu0 0.0
      %765 = vmatmul.mubr.f32.gmra.mrb[0].mxu0 %v449
      %v766 = vpop.f32.mrb[0].mxu0
      %v767 = vadd.f32 %v355, %v766
      %v768 = vpop.f32.mrb[0].mxu0
      %769 = vmatprep.mubr.f32.mxu0 0.0
      %770 = vmatmul.mubr.f32.gmra.mrb[0].mxu0 %v452
      %v771 = vpop.f32.mrb[0].mxu0
      %v772 = vadd.f32 %v355, %v771
      %v773 = vpop.f32.mrb[0].mxu0
      %774 = vmatprep.mubr.f32.mxu0 0.0
      %775 = vmatmul.mubr.f32.gmra.mrb[0].mxu0 %v455
      %v776 = vpop.f32.mrb[0].mxu0
      %v777 = vadd.f32 %v355, %v776
      %v778 = vpop.f32.mrb[0].mxu0
      %779 = vmatprep.mubr.f32.mxu0 0.0
      %780 = vmatmul.mubr.f32.gmra.mrb[0].mxu0 %v458
      %v781 = vpop.f32.mrb[0].mxu0
      %v782 = vadd.f32 %v355, %v781
      %v783 = vpop.f32.mrb[0].mxu0
      %784 = vmatprep.mubr.f32.mxu0 0.0
      %785 = vmatmul.mubr.f32.gmra.mrb[0].mxu0 %v461
      %v786 = vpop.f32.mrb[0].mxu0
      %v787 = vadd.f32 %v355, %v786
      %v788 = vpop.f32.mrb[0].mxu0
      %789 = vmatprep.mubr.f32.mxu0 0.0
      %790 = vmatmul.mubr.f32.gmra.mrb[0].mxu0 %v464
      %v791 = vpop.f32.mrb[0].mxu0
      %v792 = vadd.f32 %v355, %v791
      %v793 = vpop.f32.mrb[0].mxu0
      %794 = vmatprep.mubr.f32.mxu0 0.0
      %795 = vmatmul.mubr.f32.gmra.mrb[0].mxu0 %v467
      %v796 = vpop.f32.mrb[0].mxu0
      %v797 = vadd.f32 %v355, %v796
      %v798 = vpop.f32.mrb[0].mxu0
      %799 = vmatprep.mubr.f32.mxu0 0.0
      %800 = vmatmul.mubr.f32.gmra.mrb[0].mxu0 %v470
      %v801 = vpop.f32.mrb[0].mxu0
      %v802 = vadd.f32 %v355, %v801
      %v803 = vpop.f32.mrb[0].mxu0
      %804 = vmatprep.mubr.f32.mxu0 0.0
      %805 = vmatmul.mubr.f32.gmra.mrb[0].mxu0 %v473
      %v806 = vpop.f32.mrb[0].mxu0
      %v807 = vadd.f32 %v355, %v806
      %v808 = vpop.f32.mrb[0].mxu0
      %809 = vmatprep.mubr.f32.mxu0 0.0
      %810 = vmatmul.mubr.f32.gmra.mrb[0].mxu0 %v476
      %v811 = vpop.f32.mrb[0].mxu0
      %v812 = vadd.f32 %v355, %v811
      %v813 = vpop.f32.mrb[0].mxu0
      %814 = vmatprep.mubr.f32.mxu0 0.0
      %815 = vmatmul.mubr.f32.gmra.mrb[0].mxu0 %v479
      %v816 = vpop.f32.mrb[0].mxu0
      %v817 = vadd.f32 %v355, %v816
      %v818 = vpop.f32.mrb[0].mxu0
      %819 = vmatprep.mubr.f32.mxu0 0.0
      %820 = vmatmul.mubr.f32.gmra.mrb[0].mxu0 %v482
      %v821 = vpop.f32.mrb[0].mxu0
      %v822 = vadd.f32 %v355, %v821
      %v823 = vpop.f32.mrb[0].mxu0
      %824 = vmatprep.mubr.f32.mxu0 0.0
      %825 = vmatmul.mubr.f32.gmra.mrb[0].mxu0 %v485
      %v826 = vpop.f32.mrb[0].mxu0
      %v827 = vadd.f32 %v355, %v826
      %v828 = vpop.f32.mrb[0].mxu0
      %829 = vmatprep.mubr.f32.mxu0 0.0
      %830 = vmatmul.mubr.f32.gmra.mrb[0].mxu0 %v488
      %v831 = vpop.f32.mrb[0].mxu0
      %v832 = vadd.f32 %v355, %v831
      %v833 = vpop.f32.mrb[0].mxu0
      %834 = vmatprep.mubr.f32.mxu0 0.0
      %835 = vmatmul.mubr.f32.gmra.mrb[0].mxu0 %v491
      %v836 = vpop.f32.mrb[0].mxu0
      %v837 = vadd.f32 %v355, %v836
      %v838 = vpop.f32.mrb[0].mxu0
      %839 = vmatprep.mubr.f32.mxu0 0.0
      %840 = vmatmul.mubr.f32.gmra.mrb[0].mxu0 %v494
      %v841 = vpop.f32.mrb[0].mxu0
      %v842 = vadd.f32 %v355, %v841
      %v843 = vpop.f32.mrb[0].mxu0
      %844 = vmatprep.mubr.f32.mxu0 0.0
      %845 = vmatmul.mubr.f32.gmra.mrb[0].mxu0 %v497
      %v846 = vpop.f32.mrb[0].mxu0
      %v847 = vadd.f32 %v355, %v846
      %v848 = vpop.f32.mrb[0].mxu0
      %849 = vmatprep.mubr.f32.mxu0 0.0
      %850 = vmatmul.mubr.f32.gmra.mrb[0].mxu0 %v500
      %v851 = vpop.f32.mrb[0].mxu0
      %v852 = vadd.f32 %v355, %v851
      %v853 = vpop.f32.mrb[0].mxu0
      %854 = vmatprep.mubr.f32.mxu0 0.0
      %855 = vmatmul.mubr.f32.gmra.mrb[0].mxu0 %v503
      %v856 = vpop.f32.mrb[0].mxu0
      %v857 = vadd.f32 %v355, %v856
      %v858 = vpop.f32.mrb[0].mxu0
      %859 = vmatprep.mubr.f32.mxu0 0.0
      %860 = vmatmul.mubr.f32.gmra.mrb[0].mxu0 %v506
      %v861 = vpop.f32.mrb[0].mxu0
      %v862 = vadd.f32 %v355, %v861
      %v863 = vpop.f32.mrb[0].mxu0
      %864 = vmatprep.mubr.f32.mxu0 0.0
      %865 = vmatmul.mubr.f32.gmra.mrb[0].mxu0 %v509
      %v866 = vpop.f32.mrb[0].mxu0
      %v867 = vadd.f32 %v355, %v866
      %v868 = vpop.f32.mrb[0].mxu0
      %869 = vmatprep.mubr.f32.mxu0 0.0
      %870 = vmatmul.mubr.f32.gmra.mrb[0].mxu0 %v512
      %v871 = vpop.f32.mrb[0].mxu0
      %v872 = vadd.f32 %v355, %v871
      %v873 = vpop.f32.mrb[0].mxu0
      %874 = vmatprep.mubr.f32.mxu0 0.0
      %875 = vmatmul.mubr.f32.gmra.mrb[0].mxu0 %v515
      %v876 = vpop.f32.mrb[0].mxu0
      %v877 = vadd.f32 %v355, %v876
      %v878 = vpop.f32.mrb[0].mxu0
      %879 = vmatprep.mubr.f32.mxu0 0.0
      %880 = vmatmul.mubr.f32.gmra.mrb[0].mxu0 %v518
      %v881 = vpop.f32.mrb[0].mxu0
      %v882 = vadd.f32 %v355, %v881
      %v883 = vpop.f32.mrb[0].mxu0
      %884 = vmatprep.mubr.f32.mxu0 0.0
      %885 = vmatmul.mubr.f32.gmra.mrb[0].mxu0 %v521
      %v886 = vpop.f32.mrb[0].mxu0
      %v887 = vadd.f32 %v355, %v886
      %v888 = vpop.f32.mrb[0].mxu0
      %889 = vmatprep.mubr.f32.mxu0 0.0
      %890 = vmatmul.mubr.f32.gmra.mrb[0].mxu0 %v524
      %v891 = vpop.f32.mrb[0].mxu0
      %v892 = vadd.f32 %v355, %v891
      %v893 = vpop.f32.mrb[0].mxu0
      %894 = vmatprep.mubr.f32.mxu0 0.0
      %895 = vmatmul.mubr.f32.gmra.mrb[0].mxu0 %v527
      %v896 = vpop.f32.mrb[0].mxu0
      %v897 = vadd.f32 %v355, %v896
      %v898 = vpop.f32.mrb[0].mxu0
      %899 = vmatprep.mubr.f32.mxu0 0.0
      %900 = vmatmul.mubr.f32.gmra.mrb[0].mxu0 %v530
      %v901 = vpop.f32.mrb[0].mxu0
      %v902 = vadd.f32 %v355, %v901
      %v903 = vpop.f32.mrb[0].mxu0
      %904 = vmatprep.mubr.f32.mxu0 0.0
      %905 = vmatmul.mubr.f32.gmra.mrb[0].mxu0 %v533
      %v906 = vpop.f32.mrb[0].mxu0
      %v907 = vadd.f32 %v355, %v906
      %v908 = vpop.f32.mrb[0].mxu0
      %909 = vmatprep.mubr.f32.mxu0 0.0
      %910 = vmatmul.mubr.f32.gmra.mrb[0].mxu0 %v536
      %v911 = vpop.f32.mrb[0].mxu0
      %v912 = vadd.f32 %v355, %v911
      %v913 = vpop.f32.mrb[0].mxu0
      %914 = vmatprep.mubr.f32.mxu0 0.0
      %915 = vmatmul.mubr.f32.gmra.mrb[0].mxu0 %v539
      %v916 = vpop.f32.mrb[0].mxu0
      %v917 = vadd.f32 %v355, %v916
      %v918 = vpop.f32.mrb[0].mxu0
      %919 = vmatprep.mubr.f32.mxu0 0.0
      %920 = vmatmul.mubr.f32.gmra.mrb[0].mxu0 %v542
      %v921 = vpop.f32.mrb[0].mxu0
      %v922 = vadd.f32 %v355, %v921
      %v923 = vpop.f32.mrb[0].mxu0
      %924 = vmatprep.mubr.f32.mxu0 0.0
      %925 = vmatmul.mubr.f32.gmra.mrb[0].mxu0 %v545
      %v926 = vpop.f32.mrb[0].mxu0
      %v927 = vadd.f32 %v355, %v926
      %v928 = vpop.f32.mrb[0].mxu0
      %929 = vmatprep.mubr.f32.mxu0 0.0
      %930 = vmatmul.mubr.f32.gmra.mrb[0].mxu0 %v548
      %v931 = vpop.f32.mrb[0].mxu0
      %v932 = vadd.f32 %v355, %v931
      %v933 = vpop.f32.mrb[0].mxu0
      %934 = vdwg.mxu0
      %v935 = vmax.f32 %v617, 0.0
      %v936 = vmax.f32 %v622, 0.0
      %v937 = vmax.f32 %v627, 0.0
      %v938 = vmax.f32 %v632, 0.0
      %v939 = vmax.f32 %v637, 0.0
      %v940 = vmax.f32 %v642, 0.0
      %v941 = vmax.f32 %v647, 0.0
      %v942 = vmax.f32 %v652, 0.0
      %v943 = vmax.f32 %v657, 0.0
      %v944 = vmax.f32 %v662, 0.0
      %v945 = vmax.f32 %v667, 0.0
      %v946 = vmax.f32 %v672, 0.0
      %v947 = vmax.f32 %v677, 0.0
      %v948 = vmax.f32 %v682, 0.0
      %v949 = vmax.f32 %v687, 0.0
      %v950 = vmax.f32 %v692, 0.0
      %v951 = vmax.f32 %v697, 0.0
      %v952 = vmax.f32 %v702, 0.0
      %v953 = vmax.f32 %v707, 0.0
      %v954 = vmax.f32 %v712, 0.0
      %v955 = vmax.f32 %v717, 0.0
      %v956 = vmax.f32 %v722, 0.0
      %v957 = vmax.f32 %v727, 0.0
      %v958 = vmax.f32 %v732, 0.0
      %v959 = vmax.f32 %v737, 0.0
      %v960 = vmax.f32 %v742, 0.0
      %v961 = vmax.f32 %v747, 0.0
      %v962 = vmax.f32 %v752, 0.0
      %v963 = vmax.f32 %v757, 0.0
      %v964 = vmax.f32 %v762, 0.0
      %v965 = vmax.f32 %v767, 0.0
      %v966 = vmax.f32 %v772, 0.0
      %v967 = vmax.f32 %v777, 0.0
      %v968 = vmax.f32 %v782, 0.0
      %v969 = vmax.f32 %v787, 0.0
      %v970 = vmax.f32 %v792, 0.0
      %v971 = vmax.f32 %v797, 0.0
      %v972 = vmax.f32 %v802, 0.0
      %v973 = vmax.f32 %v807, 0.0
      %v974 = vmax.f32 %v812, 0.0
      %v975 = vmax.f32 %v817, 0.0
      %v976 = vmax.f32 %v822, 0.0
      %v977 = vmax.f32 %v827, 0.0
      %v978 = vmax.f32 %v832, 0.0
      %v979 = vmax.f32 %v837, 0.0
      %v980 = vmax.f32 %v842, 0.0
      %v981 = vmax.f32 %v847, 0.0
      %v982 = vmax.f32 %v852, 0.0
      %v983 = vmax.f32 %v857, 0.0
      %v984 = vmax.f32 %v862, 0.0
      %v985 = vmax.f32 %v867, 0.0
      %v986 = vmax.f32 %v872, 0.0
      %v987 = vmax.f32 %v877, 0.0
      %v988 = vmax.f32 %v882, 0.0
      %v989 = vmax.f32 %v887, 0.0
      %v990 = vmax.f32 %v892, 0.0
      %v991 = vmax.f32 %v897, 0.0
      %v992 = vmax.f32 %v902, 0.0
      %v993 = vmax.f32 %v907, 0.0
      %v994 = vmax.f32 %v912, 0.0
      %v995 = vmax.f32 %v917, 0.0
      %v996 = vmax.f32 %v922, 0.0
      %v997 = vmax.f32 %v927, 0.0
      %v998 = vmax.f32 %v932, 0.0
      %v999 = vld [vmem:[%s3] sm:$0xff]
      %v1000 = vld [vmem:[%s3 + $0x8] sm:$0xff]
      %v1001 = vld [vmem:[%s4] sm:$0x1]
      %v1003 = vlaneseq
      %v1004 = vshrl.u32 %v1003, 7
      %v1005 = vsub.s32 0, %v1004
      %v1006 = vrot.slane %v1001, %v1005
      %vm1008 = vcmask 130048
      %v1010 = vsel %vm1008, %v935, 0
      %v1013 = vsel %vm1008, %v936, 0
      %v1016 = vsel %vm1008, %v937, 0
      %v1019 = vsel %vm1008, %v938, 0
      %v1022 = vsel %vm1008, %v939, 0
      %v1025 = vsel %vm1008, %v940, 0
      %v1028 = vsel %vm1008, %v941, 0
      %v1031 = vsel %vm1008, %v942, 0
      %v1034 = vsel %vm1008, %v943, 0
      %v1037 = vsel %vm1008, %v944, 0
      %v1040 = vsel %vm1008, %v945, 0
      %v1043 = vsel %vm1008, %v946, 0
      %v1046 = vsel %vm1008, %v947, 0
      %v1049 = vsel %vm1008, %v948, 0
      %v1052 = vsel %vm1008, %v949, 0
      %v1055 = vsel %vm1008, %v950, 0
      %v1058 = vsel %vm1008, %v951, 0
      %v1061 = vsel %vm1008, %v952, 0
      %v1064 = vsel %vm1008, %v953, 0
      %v1067 = vsel %vm1008, %v954, 0
      %v1070 = vsel %vm1008, %v955, 0
      %v1073 = vsel %vm1008, %v956, 0
      %v1076 = vsel %vm1008, %v957, 0
      %v1079 = vsel %vm1008, %v958, 0
      %v1082 = vsel %vm1008, %v959, 0
      %v1085 = vsel %vm1008, %v960, 0
      %v1088 = vsel %vm1008, %v961, 0
      %v1091 = vsel %vm1008, %v962, 0
      %v1094 = vsel %vm1008, %v963, 0
      %v1097 = vsel %vm1008, %v964, 0
      %v1100 = vsel %vm1008, %v965, 0
      %v1103 = vsel %vm1008, %v966, 0
      %v1106 = vsel %vm1008, %v967, 0
      %v1109 = vsel %vm1008, %v968, 0
      %v1112 = vsel %vm1008, %v969, 0
      %v1115 = vsel %vm1008, %v970, 0
      %v1118 = vsel %vm1008, %v971, 0
      %v1121 = vsel %vm1008, %v972, 0
      %v1124 = vsel %vm1008, %v973, 0
      %v1127 = vsel %vm1008, %v974, 0
      %v1130 = vsel %vm1008, %v975, 0
      %v1133 = vsel %vm1008, %v976, 0
      %v1136 = vsel %vm1008, %v977, 0
      %v1139 = vsel %vm1008, %v978, 0
      %v1142 = vsel %vm1008, %v979, 0
      %v1145 = vsel %vm1008, %v980, 0
      %v1148 = vsel %vm1008, %v981, 0
      %v1151 = vsel %vm1008, %v982, 0
      %v1154 = vsel %vm1008, %v983, 0
      %v1157 = vsel %vm1008, %v984, 0
      %v1160 = vsel %vm1008, %v985, 0
      %v1163 = vsel %vm1008, %v986, 0
      %v1166 = vsel %vm1008, %v987, 0
      %v1169 = vsel %vm1008, %v988, 0
      %v1172 = vsel %vm1008, %v989, 0
      %v1175 = vsel %vm1008, %v990, 0
      %v1178 = vsel %vm1008, %v991, 0
      %v1181 = vsel %vm1008, %v992, 0
      %v1184 = vsel %vm1008, %v993, 0
      %v1187 = vsel %vm1008, %v994, 0
      %v1190 = vsel %vm1008, %v995, 0
      %v1193 = vsel %vm1008, %v996, 0
      %v1196 = vsel %vm1008, %v997, 0
      %v1199 = vsel %vm1008, %v998, 0
      %1201 = vmatprep.subr.mxu0 0.0
      %1202 = vmatpush1.msra.mxu0 %v999
      %1203 = vmatprep.subr.mxu0 0.0
      %1204 = vmatpush1.msra.mxu0 %v1000
      %1205 = vmatprep.subr.mxu0 0.0
      %1206 = vmatpush1.msra.mxu0 0.0
      %1207 = vmatprep.subr.mxu0 0.0
      %1208 = vmatpush1.msra.mxu0 0.0
      %1209 = vmatprep.subr.mxu0 0.0
      %1210 = vmatpush1.msra.mxu0 0.0
      %1211 = vmatprep.subr.mxu0 0.0
      %1212 = vmatpush1.msra.mxu0 0.0
      %1213 = vmatprep.subr.mxu0 0.0
      %1214 = vmatpush1.msra.mxu0 0.0
      %1215 = vmatprep.subr.mxu0 0.0
      %1216 = vmatpush1.msra.mxu0 0.0
      %1217 = vmatprep.subr.mxu0 0.0
      %1218 = vmatpush1.msra.mxu0 0.0
      %1219 = vmatprep.subr.mxu0 0.0
      %1220 = vmatpush1.msra.mxu0 0.0
      %1221 = vmatprep.subr.mxu0 0.0
      %1222 = vmatpush1.msra.mxu0 0.0
      %1223 = vmatprep.subr.mxu0 0.0
      %1224 = vmatpush1.msra.mxu0 0.0
      %1225 = vmatprep.subr.mxu0 0.0
      %1226 = vmatpush1.msra.mxu0 0.0
      %1227 = vmatprep.subr.mxu0 0.0
      %1228 = vmatpush1.msra.mxu0 0.0
      %1229 = vmatprep.subr.mxu0 0.0
      %1230 = vmatpush1.msra.mxu0 0.0
      %1231 = vmatprep.subr.mxu0 0.0
      %1232 = vmatpush1.msra.mxu0 0.0
      %1233 = vmatprep.subr.mxu0 0.0
      %1234 = vmatpush1.msra.mxu0 0.0
      %1235 = vmatprep.subr.mxu0 0.0
      %1236 = vmatpush1.msra.mxu0 0.0
      %1237 = vmatprep.subr.mxu0 0.0
      %1238 = vmatpush1.msra.mxu0 0.0
      %1239 = vmatprep.subr.mxu0 0.0
      %1240 = vmatpush1.msra.mxu0 0.0
      %1241 = vmatprep.subr.mxu0 0.0
      %1242 = vmatpush1.msra.mxu0 0.0
      %1243 = vmatprep.subr.mxu0 0.0
      %1244 = vmatpush1.msra.mxu0 0.0
      %1245 = vmatprep.subr.mxu0 0.0
      %1246 = vmatpush1.msra.mxu0 0.0
      %1247 = vmatprep.subr.mxu0 0.0
      %1248 = vmatpush1.msra.mxu0 0.0
      %1249 = vmatprep.subr.mxu0 0.0
      %1250 = vmatpush1.msra.mxu0 0.0
      %1251 = vmatprep.subr.mxu0 0.0
      %1252 = vmatpush1.msra.mxu0 0.0
      %1253 = vmatprep.subr.mxu0 0.0
      %1254 = vmatpush1.msra.mxu0 0.0
      %1255 = vmatprep.subr.mxu0 0.0
      %1256 = vmatpush1.msra.mxu0 0.0
      %1257 = vmatprep.subr.mxu0 0.0
      %1258 = vmatpush1.msra.mxu0 0.0
      %1259 = vmatprep.subr.mxu0 0.0
      %1260 = vmatpush1.msra.mxu0 0.0
      %1261 = vmatprep.subr.mxu0 0.0
      %1262 = vmatpush1.msra.mxu0 0.0
      %1263 = vmatprep.subr.mxu0 0.0
      %1264 = vmatpush1.msra.mxu0 0.0
      %1265 = vmatprep.mubr.f32.mxu0 0.0
      %1266 = vmatmul.mubr.f32.gmra.mrb[0].mxu0 %v1010
      %v1267 = vpop.f32.mrb[0].mxu0
      %v1268 = vadd.f32 %v1006, %v1267
      %v1269 = vpop.f32.mrb[0].mxu0
      %1270 = vmatprep.mubr.f32.mxu0 0.0
      %1271 = vmatmul.mubr.f32.gmra.mrb[0].mxu0 %v1013
      %v1272 = vpop.f32.mrb[0].mxu0
      %v1273 = vadd.f32 %v1006, %v1272
      %v1274 = vpop.f32.mrb[0].mxu0
      %1275 = vmatprep.mubr.f32.mxu0 0.0
      %1276 = vmatmul.mubr.f32.gmra.mrb[0].mxu0 %v1016
      %v1277 = vpop.f32.mrb[0].mxu0
      %v1278 = vadd.f32 %v1006, %v1277
      %v1279 = vpop.f32.mrb[0].mxu0
      %1280 = vmatprep.mubr.f32.mxu0 0.0
      %1281 = vmatmul.mubr.f32.gmra.mrb[0].mxu0 %v1019
      %v1282 = vpop.f32.mrb[0].mxu0
      %v1283 = vadd.f32 %v1006, %v1282
      %v1284 = vpop.f32.mrb[0].mxu0
      %1285 = vmatprep.mubr.f32.mxu0 0.0
      %1286 = vmatmul.mubr.f32.gmra.mrb[0].mxu0 %v1022
      %v1287 = vpop.f32.mrb[0].mxu0
      %v1288 = vadd.f32 %v1006, %v1287
      %v1289 = vpop.f32.mrb[0].mxu0
      %1290 = vmatprep.mubr.f32.mxu0 0.0
      %1291 = vmatmul.mubr.f32.gmra.mrb[0].mxu0 %v1025
      %v1292 = vpop.f32.mrb[0].mxu0
      %v1293 = vadd.f32 %v1006, %v1292
      %v1294 = vpop.f32.mrb[0].mxu0
      %1295 = vmatprep.mubr.f32.mxu0 0.0
      %1296 = vmatmul.mubr.f32.gmra.mrb[0].mxu0 %v1028
      %v1297 = vpop.f32.mrb[0].mxu0
      %v1298 = vadd.f32 %v1006, %v1297
      %v1299 = vpop.f32.mrb[0].mxu0
      %1300 = vmatprep.mubr.f32.mxu0 0.0
      %1301 = vmatmul.mubr.f32.gmra.mrb[0].mxu0 %v1031
      %v1302 = vpop.f32.mrb[0].mxu0
      %v1303 = vadd.f32 %v1006, %v1302
      %v1304 = vpop.f32.mrb[0].mxu0
      %1305 = vmatprep.mubr.f32.mxu0 0.0
      %1306 = vmatmul.mubr.f32.gmra.mrb[0].mxu0 %v1034
      %v1307 = vpop.f32.mrb[0].mxu0
      %v1308 = vadd.f32 %v1006, %v1307
      %v1309 = vpop.f32.mrb[0].mxu0
      %1310 = vmatprep.mubr.f32.mxu0 0.0
      %1311 = vmatmul.mubr.f32.gmra.mrb[0].mxu0 %v1037
      %v1312 = vpop.f32.mrb[0].mxu0
      %v1313 = vadd.f32 %v1006, %v1312
      %v1314 = vpop.f32.mrb[0].mxu0
      %1315 = vmatprep.mubr.f32.mxu0 0.0
      %1316 = vmatmul.mubr.f32.gmra.mrb[0].mxu0 %v1040
      %v1317 = vpop.f32.mrb[0].mxu0
      %v1318 = vadd.f32 %v1006, %v1317
      %v1319 = vpop.f32.mrb[0].mxu0
      %1320 = vmatprep.mubr.f32.mxu0 0.0
      %1321 = vmatmul.mubr.f32.gmra.mrb[0].mxu0 %v1043
      %v1322 = vpop.f32.mrb[0].mxu0
      %v1323 = vadd.f32 %v1006, %v1322
      %v1324 = vpop.f32.mrb[0].mxu0
      %1325 = vmatprep.mubr.f32.mxu0 0.0
      %1326 = vmatmul.mubr.f32.gmra.mrb[0].mxu0 %v1046
      %v1327 = vpop.f32.mrb[0].mxu0
      %v1328 = vadd.f32 %v1006, %v1327
      %v1329 = vpop.f32.mrb[0].mxu0
      %1330 = vmatprep.mubr.f32.mxu0 0.0
      %1331 = vmatmul.mubr.f32.gmra.mrb[0].mxu0 %v1049
      %v1332 = vpop.f32.mrb[0].mxu0
      %v1333 = vadd.f32 %v1006, %v1332
      %v1334 = vpop.f32.mrb[0].mxu0
      %1335 = vmatprep.mubr.f32.mxu0 0.0
      %1336 = vmatmul.mubr.f32.gmra.mrb[0].mxu0 %v1052
      %v1337 = vpop.f32.mrb[0].mxu0
      %v1338 = vadd.f32 %v1006, %v1337
      %v1339 = vpop.f32.mrb[0].mxu0
      %1340 = vmatprep.mubr.f32.mxu0 0.0
      %1341 = vmatmul.mubr.f32.gmra.mrb[0].mxu0 %v1055
      %v1342 = vpop.f32.mrb[0].mxu0
      %v1343 = vadd.f32 %v1006, %v1342
      %v1344 = vpop.f32.mrb[0].mxu0
      %1345 = vmatprep.mubr.f32.mxu0 0.0
      %1346 = vmatmul.mubr.f32.gmra.mrb[0].mxu0 %v1058
      %v1347 = vpop.f32.mrb[0].mxu0
      %v1348 = vadd.f32 %v1006, %v1347
      %v1349 = vpop.f32.mrb[0].mxu0
      %1350 = vmatprep.mubr.f32.mxu0 0.0
      %1351 = vmatmul.mubr.f32.gmra.mrb[0].mxu0 %v1061
      %v1352 = vpop.f32.mrb[0].mxu0
      %v1353 = vadd.f32 %v1006, %v1352
      %v1354 = vpop.f32.mrb[0].mxu0
      %1355 = vmatprep.mubr.f32.mxu0 0.0
      %1356 = vmatmul.mubr.f32.gmra.mrb[0].mxu0 %v1064
      %v1357 = vpop.f32.mrb[0].mxu0
      %v1358 = vadd.f32 %v1006, %v1357
      %v1359 = vpop.f32.mrb[0].mxu0
      %1360 = vmatprep.mubr.f32.mxu0 0.0
      %1361 = vmatmul.mubr.f32.gmra.mrb[0].mxu0 %v1067
      %v1362 = vpop.f32.mrb[0].mxu0
      %v1363 = vadd.f32 %v1006, %v1362
      %v1364 = vpop.f32.mrb[0].mxu0
      %1365 = vmatprep.mubr.f32.mxu0 0.0
      %1366 = vmatmul.mubr.f32.gmra.mrb[0].mxu0 %v1070
      %v1367 = vpop.f32.mrb[0].mxu0
      %v1368 = vadd.f32 %v1006, %v1367
      %v1369 = vpop.f32.mrb[0].mxu0
      %1370 = vmatprep.mubr.f32.mxu0 0.0
      %1371 = vmatmul.mubr.f32.gmra.mrb[0].mxu0 %v1073
      %v1372 = vpop.f32.mrb[0].mxu0
      %v1373 = vadd.f32 %v1006, %v1372
      %v1374 = vpop.f32.mrb[0].mxu0
      %1375 = vmatprep.mubr.f32.mxu0 0.0
      %1376 = vmatmul.mubr.f32.gmra.mrb[0].mxu0 %v1076
      %v1377 = vpop.f32.mrb[0].mxu0
      %v1378 = vadd.f32 %v1006, %v1377
      %v1379 = vpop.f32.mrb[0].mxu0
      %1380 = vmatprep.mubr.f32.mxu0 0.0
      %1381 = vmatmul.mubr.f32.gmra.mrb[0].mxu0 %v1079
      %v1382 = vpop.f32.mrb[0].mxu0
      %v1383 = vadd.f32 %v1006, %v1382
      %v1384 = vpop.f32.mrb[0].mxu0
      %1385 = vmatprep.mubr.f32.mxu0 0.0
      %1386 = vmatmul.mubr.f32.gmra.mrb[0].mxu0 %v1082
      %v1387 = vpop.f32.mrb[0].mxu0
      %v1388 = vadd.f32 %v1006, %v1387
      %v1389 = vpop.f32.mrb[0].mxu0
      %1390 = vmatprep.mubr.f32.mxu0 0.0
      %1391 = vmatmul.mubr.f32.gmra.mrb[0].mxu0 %v1085
      %v1392 = vpop.f32.mrb[0].mxu0
      %v1393 = vadd.f32 %v1006, %v1392
      %v1394 = vpop.f32.mrb[0].mxu0
      %1395 = vmatprep.mubr.f32.mxu0 0.0
      %1396 = vmatmul.mubr.f32.gmra.mrb[0].mxu0 %v1088
      %v1397 = vpop.f32.mrb[0].mxu0
      %v1398 = vadd.f32 %v1006, %v1397
      %v1399 = vpop.f32.mrb[0].mxu0
      %1400 = vmatprep.mubr.f32.mxu0 0.0
      %1401 = vmatmul.mubr.f32.gmra.mrb[0].mxu0 %v1091
      %v1402 = vpop.f32.mrb[0].mxu0
      %v1403 = vadd.f32 %v1006, %v1402
      %v1404 = vpop.f32.mrb[0].mxu0
      %1405 = vmatprep.mubr.f32.mxu0 0.0
      %1406 = vmatmul.mubr.f32.gmra.mrb[0].mxu0 %v1094
      %v1407 = vpop.f32.mrb[0].mxu0
      %v1408 = vadd.f32 %v1006, %v1407
      %v1409 = vpop.f32.mrb[0].mxu0
      %1410 = vmatprep.mubr.f32.mxu0 0.0
      %1411 = vmatmul.mubr.f32.gmra.mrb[0].mxu0 %v1097
      %v1412 = vpop.f32.mrb[0].mxu0
      %v1413 = vadd.f32 %v1006, %v1412
      %v1414 = vpop.f32.mrb[0].mxu0
      %1415 = vmatprep.mubr.f32.mxu0 0.0
      %1416 = vmatmul.mubr.f32.gmra.mrb[0].mxu0 %v1100
      %v1417 = vpop.f32.mrb[0].mxu0
      %v1418 = vadd.f32 %v1006, %v1417
      %v1419 = vpop.f32.mrb[0].mxu0
      %1420 = vmatprep.mubr.f32.mxu0 0.0
      %1421 = vmatmul.mubr.f32.gmra.mrb[0].mxu0 %v1103
      %v1422 = vpop.f32.mrb[0].mxu0
      %v1423 = vadd.f32 %v1006, %v1422
      %v1424 = vpop.f32.mrb[0].mxu0
      %1425 = vmatprep.mubr.f32.mxu0 0.0
      %1426 = vmatmul.mubr.f32.gmra.mrb[0].mxu0 %v1106
      %v1427 = vpop.f32.mrb[0].mxu0
      %v1428 = vadd.f32 %v1006, %v1427
      %v1429 = vpop.f32.mrb[0].mxu0
      %1430 = vmatprep.mubr.f32.mxu0 0.0
      %1431 = vmatmul.mubr.f32.gmra.mrb[0].mxu0 %v1109
      %v1432 = vpop.f32.mrb[0].mxu0
      %v1433 = vadd.f32 %v1006, %v1432
      %v1434 = vpop.f32.mrb[0].mxu0
      %1435 = vmatprep.mubr.f32.mxu0 0.0
      %1436 = vmatmul.mubr.f32.gmra.mrb[0].mxu0 %v1112
      %v1437 = vpop.f32.mrb[0].mxu0
      %v1438 = vadd.f32 %v1006, %v1437
      %v1439 = vpop.f32.mrb[0].mxu0
      %1440 = vmatprep.mubr.f32.mxu0 0.0
      %1441 = vmatmul.mubr.f32.gmra.mrb[0].mxu0 %v1115
      %v1442 = vpop.f32.mrb[0].mxu0
      %v1443 = vadd.f32 %v1006, %v1442
      %v1444 = vpop.f32.mrb[0].mxu0
      %1445 = vmatprep.mubr.f32.mxu0 0.0
      %1446 = vmatmul.mubr.f32.gmra.mrb[0].mxu0 %v1118
      %v1447 = vpop.f32.mrb[0].mxu0
      %v1448 = vadd.f32 %v1006, %v1447
      %v1449 = vpop.f32.mrb[0].mxu0
      %1450 = vmatprep.mubr.f32.mxu0 0.0
      %1451 = vmatmul.mubr.f32.gmra.mrb[0].mxu0 %v1121
      %v1452 = vpop.f32.mrb[0].mxu0
      %v1453 = vadd.f32 %v1006, %v1452
      %v1454 = vpop.f32.mrb[0].mxu0
      %1455 = vmatprep.mubr.f32.mxu0 0.0
      %1456 = vmatmul.mubr.f32.gmra.mrb[0].mxu0 %v1124
      %v1457 = vpop.f32.mrb[0].mxu0
      %v1458 = vadd.f32 %v1006, %v1457
      %v1459 = vpop.f32.mrb[0].mxu0
      %1460 = vmatprep.mubr.f32.mxu0 0.0
      %1461 = vmatmul.mubr.f32.gmra.mrb[0].mxu0 %v1127
      %v1462 = vpop.f32.mrb[0].mxu0
      %v1463 = vadd.f32 %v1006, %v1462
      %v1464 = vpop.f32.mrb[0].mxu0
      %1465 = vmatprep.mubr.f32.mxu0 0.0
      %1466 = vmatmul.mubr.f32.gmra.mrb[0].mxu0 %v1130
      %v1467 = vpop.f32.mrb[0].mxu0
      %v1468 = vadd.f32 %v1006, %v1467
      %v1469 = vpop.f32.mrb[0].mxu0
      %1470 = vmatprep.mubr.f32.mxu0 0.0
      %1471 = vmatmul.mubr.f32.gmra.mrb[0].mxu0 %v1133
      %v1472 = vpop.f32.mrb[0].mxu0
      %v1473 = vadd.f32 %v1006, %v1472
      %v1474 = vpop.f32.mrb[0].mxu0
      %1475 = vmatprep.mubr.f32.mxu0 0.0
      %1476 = vmatmul.mubr.f32.gmra.mrb[0].mxu0 %v1136
      %v1477 = vpop.f32.mrb[0].mxu0
      %v1478 = vadd.f32 %v1006, %v1477
      %v1479 = vpop.f32.mrb[0].mxu0
      %1480 = vmatprep.mubr.f32.mxu0 0.0
      %1481 = vmatmul.mubr.f32.gmra.mrb[0].mxu0 %v1139
      %v1482 = vpop.f32.mrb[0].mxu0
      %v1483 = vadd.f32 %v1006, %v1482
      %v1484 = vpop.f32.mrb[0].mxu0
      %1485 = vmatprep.mubr.f32.mxu0 0.0
      %1486 = vmatmul.mubr.f32.gmra.mrb[0].mxu0 %v1142
      %v1487 = vpop.f32.mrb[0].mxu0
      %v1488 = vadd.f32 %v1006, %v1487
      %v1489 = vpop.f32.mrb[0].mxu0
      %1490 = vmatprep.mubr.f32.mxu0 0.0
      %1491 = vmatmul.mubr.f32.gmra.mrb[0].mxu0 %v1145
      %v1492 = vpop.f32.mrb[0].mxu0
      %v1493 = vadd.f32 %v1006, %v1492
      %v1494 = vpop.f32.mrb[0].mxu0
      %1495 = vmatprep.mubr.f32.mxu0 0.0
      %1496 = vmatmul.mubr.f32.gmra.mrb[0].mxu0 %v1148
      %v1497 = vpop.f32.mrb[0].mxu0
      %v1498 = vadd.f32 %v1006, %v1497
      %v1499 = vpop.f32.mrb[0].mxu0
      %1500 = vmatprep.mubr.f32.mxu0 0.0
      %1501 = vmatmul.mubr.f32.gmra.mrb[0].mxu0 %v1151
      %v1502 = vpop.f32.mrb[0].mxu0
      %v1503 = vadd.f32 %v1006, %v1502
      %v1504 = vpop.f32.mrb[0].mxu0
      %1505 = vmatprep.mubr.f32.mxu0 0.0
      %1506 = vmatmul.mubr.f32.gmra.mrb[0].mxu0 %v1154
      %v1507 = vpop.f32.mrb[0].mxu0
      %v1508 = vadd.f32 %v1006, %v1507
      %v1509 = vpop.f32.mrb[0].mxu0
      %1510 = vmatprep.mubr.f32.mxu0 0.0
      %1511 = vmatmul.mubr.f32.gmra.mrb[0].mxu0 %v1157
      %v1512 = vpop.f32.mrb[0].mxu0
      %v1513 = vadd.f32 %v1006, %v1512
      %v1514 = vpop.f32.mrb[0].mxu0
      %1515 = vmatprep.mubr.f32.mxu0 0.0
      %1516 = vmatmul.mubr.f32.gmra.mrb[0].mxu0 %v1160
      %v1517 = vpop.f32.mrb[0].mxu0
      %v1518 = vadd.f32 %v1006, %v1517
      %v1519 = vpop.f32.mrb[0].mxu0
      %1520 = vmatprep.mubr.f32.mxu0 0.0
      %1521 = vmatmul.mubr.f32.gmra.mrb[0].mxu0 %v1163
      %v1522 = vpop.f32.mrb[0].mxu0
      %v1523 = vadd.f32 %v1006, %v1522
      %v1524 = vpop.f32.mrb[0].mxu0
      %1525 = vmatprep.mubr.f32.mxu0 0.0
      %1526 = vmatmul.mubr.f32.gmra.mrb[0].mxu0 %v1166
      %v1527 = vpop.f32.mrb[0].mxu0
      %v1528 = vadd.f32 %v1006, %v1527
      %v1529 = vpop.f32.mrb[0].mxu0
      %1530 = vmatprep.mubr.f32.mxu0 0.0
      %1531 = vmatmul.mubr.f32.gmra.mrb[0].mxu0 %v1169
      %v1532 = vpop.f32.mrb[0].mxu0
      %v1533 = vadd.f32 %v1006, %v1532
      %v1534 = vpop.f32.mrb[0].mxu0
      %1535 = vmatprep.mubr.f32.mxu0 0.0
      %1536 = vmatmul.mubr.f32.gmra.mrb[0].mxu0 %v1172
      %v1537 = vpop.f32.mrb[0].mxu0
      %v1538 = vadd.f32 %v1006, %v1537
      %v1539 = vpop.f32.mrb[0].mxu0
      %1540 = vmatprep.mubr.f32.mxu0 0.0
      %1541 = vmatmul.mubr.f32.gmra.mrb[0].mxu0 %v1175
      %v1542 = vpop.f32.mrb[0].mxu0
      %v1543 = vadd.f32 %v1006, %v1542
      %v1544 = vpop.f32.mrb[0].mxu0
      %1545 = vmatprep.mubr.f32.mxu0 0.0
      %1546 = vmatmul.mubr.f32.gmra.mrb[0].mxu0 %v1178
      %v1547 = vpop.f32.mrb[0].mxu0
      %v1548 = vadd.f32 %v1006, %v1547
      %v1549 = vpop.f32.mrb[0].mxu0
      %1550 = vmatprep.mubr.f32.mxu0 0.0
      %1551 = vmatmul.mubr.f32.gmra.mrb[0].mxu0 %v1181
      %v1552 = vpop.f32.mrb[0].mxu0
      %v1553 = vadd.f32 %v1006, %v1552
      %v1554 = vpop.f32.mrb[0].mxu0
      %1555 = vmatprep.mubr.f32.mxu0 0.0
      %1556 = vmatmul.mubr.f32.gmra.mrb[0].mxu0 %v1184
      %v1557 = vpop.f32.mrb[0].mxu0
      %v1558 = vadd.f32 %v1006, %v1557
      %v1559 = vpop.f32.mrb[0].mxu0
      %1560 = vmatprep.mubr.f32.mxu0 0.0
      %1561 = vmatmul.mubr.f32.gmra.mrb[0].mxu0 %v1187
      %v1562 = vpop.f32.mrb[0].mxu0
      %v1563 = vadd.f32 %v1006, %v1562
      %v1564 = vpop.f32.mrb[0].mxu0
      %1565 = vmatprep.mubr.f32.mxu0 0.0
      %1566 = vmatmul.mubr.f32.gmra.mrb[0].mxu0 %v1190
      %v1567 = vpop.f32.mrb[0].mxu0
      %v1568 = vadd.f32 %v1006, %v1567
      %v1569 = vpop.f32.mrb[0].mxu0
      %1570 = vmatprep.mubr.f32.mxu0 0.0
      %1571 = vmatmul.mubr.f32.gmra.mrb[0].mxu0 %v1193
      %v1572 = vpop.f32.mrb[0].mxu0
      %v1573 = vadd.f32 %v1006, %v1572
      %v1574 = vpop.f32.mrb[0].mxu0
      %1575 = vmatprep.mubr.f32.mxu0 0.0
      %1576 = vmatmul.mubr.f32.gmra.mrb[0].mxu0 %v1196
      %v1577 = vpop.f32.mrb[0].mxu0
      %v1578 = vadd.f32 %v1006, %v1577
      %v1579 = vpop.f32.mrb[0].mxu0
      %1580 = vmatprep.mubr.f32.mxu0 0.0
      %1581 = vmatmul.mubr.f32.gmra.mrb[0].mxu0 %v1199
      %v1582 = vpop.f32.mrb[0].mxu0
      %v1583 = vadd.f32 %v1006, %v1582
      %v1584 = vpop.f32.mrb[0].mxu0
      %1585 = vdwg.mxu0
      %v1586 = vmax.f32 %v1268, 0.0
      %v1587 = vmax.f32 %v1273, 0.0
      %v1588 = vmax.f32 %v1278, 0.0
      %v1589 = vmax.f32 %v1283, 0.0
      %v1590 = vmax.f32 %v1288, 0.0
      %v1591 = vmax.f32 %v1293, 0.0
      %v1592 = vmax.f32 %v1298, 0.0
      %v1593 = vmax.f32 %v1303, 0.0
      %v1594 = vmax.f32 %v1308, 0.0
      %v1595 = vmax.f32 %v1313, 0.0
      %v1596 = vmax.f32 %v1318, 0.0
      %v1597 = vmax.f32 %v1323, 0.0
      %v1598 = vmax.f32 %v1328, 0.0
      %v1599 = vmax.f32 %v1333, 0.0
      %v1600 = vmax.f32 %v1338, 0.0
      %v1601 = vmax.f32 %v1343, 0.0
      %v1602 = vmax.f32 %v1348, 0.0
      %v1603 = vmax.f32 %v1353, 0.0
      %v1604 = vmax.f32 %v1358, 0.0
      %v1605 = vmax.f32 %v1363, 0.0
      %v1606 = vmax.f32 %v1368, 0.0
      %v1607 = vmax.f32 %v1373, 0.0
      %v1608 = vmax.f32 %v1378, 0.0
      %v1609 = vmax.f32 %v1383, 0.0
      %v1610 = vmax.f32 %v1388, 0.0
      %v1611 = vmax.f32 %v1393, 0.0
      %v1612 = vmax.f32 %v1398, 0.0
      %v1613 = vmax.f32 %v1403, 0.0
      %v1614 = vmax.f32 %v1408, 0.0
      %v1615 = vmax.f32 %v1413, 0.0
      %v1616 = vmax.f32 %v1418, 0.0
      %v1617 = vmax.f32 %v1423, 0.0
      %v1618 = vmax.f32 %v1428, 0.0
      %v1619 = vmax.f32 %v1433, 0.0
      %v1620 = vmax.f32 %v1438, 0.0
      %v1621 = vmax.f32 %v1443, 0.0
      %v1622 = vmax.f32 %v1448, 0.0
      %v1623 = vmax.f32 %v1453, 0.0
      %v1624 = vmax.f32 %v1458, 0.0
      %v1625 = vmax.f32 %v1463, 0.0
      %v1626 = vmax.f32 %v1468, 0.0
      %v1627 = vmax.f32 %v1473, 0.0
      %v1628 = vmax.f32 %v1478, 0.0
      %v1629 = vmax.f32 %v1483, 0.0
      %v1630 = vmax.f32 %v1488, 0.0
      %v1631 = vmax.f32 %v1493, 0.0
      %v1632 = vmax.f32 %v1498, 0.0
      %v1633 = vmax.f32 %v1503, 0.0
      %v1634 = vmax.f32 %v1508, 0.0
      %v1635 = vmax.f32 %v1513, 0.0
      %v1636 = vmax.f32 %v1518, 0.0
      %v1637 = vmax.f32 %v1523, 0.0
      %v1638 = vmax.f32 %v1528, 0.0
      %v1639 = vmax.f32 %v1533, 0.0
      %v1640 = vmax.f32 %v1538, 0.0
      %v1641 = vmax.f32 %v1543, 0.0
      %v1642 = vmax.f32 %v1548, 0.0
      %v1643 = vmax.f32 %v1553, 0.0
      %v1644 = vmax.f32 %v1558, 0.0
      %v1645 = vmax.f32 %v1563, 0.0
      %v1646 = vmax.f32 %v1568, 0.0
      %v1647 = vmax.f32 %v1573, 0.0
      %v1648 = vmax.f32 %v1578, 0.0
      %v1649 = vmax.f32 %v1583, 0.0
      %v1650 = vld [vmem:[%s5] sm:$0xff]
      %v1651 = vld [vmem:[%s6] sm:$0x1]
      %v1653 = vlaneseq
      %v1654 = vshrl.u32 %v1653, 7
      %v1655 = vsub.s32 0, %v1654
      %v1656 = vrot.slane %v1651, %v1655
      %vm1658 = vcmask 64512
      %v1660 = vsel %vm1658, %v1586, 0
      %v1663 = vsel %vm1658, %v1587, 0
      %v1666 = vsel %vm1658, %v1588, 0
      %v1669 = vsel %vm1658, %v1589, 0
      %v1672 = vsel %vm1658, %v1590, 0
      %v1675 = vsel %vm1658, %v1591, 0
      %v1678 = vsel %vm1658, %v1592, 0
      %v1681 = vsel %vm1658, %v1593, 0
      %v1684 = vsel %vm1658, %v1594, 0
      %v1687 = vsel %vm1658, %v1595, 0
      %v1690 = vsel %vm1658, %v1596, 0
      %v1693 = vsel %vm1658, %v1597, 0
      %v1696 = vsel %vm1658, %v1598, 0
      %v1699 = vsel %vm1658, %v1599, 0
      %v1702 = vsel %vm1658, %v1600, 0
      %v1705 = vsel %vm1658, %v1601, 0
      %v1708 = vsel %vm1658, %v1602, 0
      %v1711 = vsel %vm1658, %v1603, 0
      %v1714 = vsel %vm1658, %v1604, 0
      %v1717 = vsel %vm1658, %v1605, 0
      %v1720 = vsel %vm1658, %v1606, 0
      %v1723 = vsel %vm1658, %v1607, 0
      %v1726 = vsel %vm1658, %v1608, 0
      %v1729 = vsel %vm1658, %v1609, 0
      %v1732 = vsel %vm1658, %v1610, 0
      %v1735 = vsel %vm1658, %v1611, 0
      %v1738 = vsel %vm1658, %v1612, 0
      %v1741 = vsel %vm1658, %v1613, 0
      %v1744 = vsel %vm1658, %v1614, 0
      %v1747 = vsel %vm1658, %v1615, 0
      %v1750 = vsel %vm1658, %v1616, 0
      %v1753 = vsel %vm1658, %v1617, 0
      %v1756 = vsel %vm1658, %v1618, 0
      %v1759 = vsel %vm1658, %v1619, 0
      %v1762 = vsel %vm1658, %v1620, 0
      %v1765 = vsel %vm1658, %v1621, 0
      %v1768 = vsel %vm1658, %v1622, 0
      %v1771 = vsel %vm1658, %v1623, 0
      %v1774 = vsel %vm1658, %v1624, 0
      %v1777 = vsel %vm1658, %v1625, 0
      %v1780 = vsel %vm1658, %v1626, 0
      %v1783 = vsel %vm1658, %v1627, 0
      %v1786 = vsel %vm1658, %v1628, 0
      %v1789 = vsel %vm1658, %v1629, 0
      %v1792 = vsel %vm1658, %v1630, 0
      %v1795 = vsel %vm1658, %v1631, 0
      %v1798 = vsel %vm1658, %v1632, 0
      %v1801 = vsel %vm1658, %v1633, 0
      %v1804 = vsel %vm1658, %v1634, 0
      %v1807 = vsel %vm1658, %v1635, 0
      %v1810 = vsel %vm1658, %v1636, 0
      %v1813 = vsel %vm1658, %v1637, 0
      %v1816 = vsel %vm1658, %v1638, 0
      %v1819 = vsel %vm1658, %v1639, 0
      %v1822 = vsel %vm1658, %v1640, 0
      %v1825 = vsel %vm1658, %v1641, 0
      %v1828 = vsel %vm1658, %v1642, 0
      %v1831 = vsel %vm1658, %v1643, 0
      %v1834 = vsel %vm1658, %v1644, 0
      %v1837 = vsel %vm1658, %v1645, 0
      %v1840 = vsel %vm1658, %v1646, 0
      %v1843 = vsel %vm1658, %v1647, 0
      %v1846 = vsel %vm1658, %v1648, 0
      %v1849 = vsel %vm1658, %v1649, 0
      %1851 = vmatprep.subr.mxu0 0.0
      %1852 = vmatpush1.msra.mxu0 %v1650
      %1853 = vmatprep.subr.mxu0 0.0
      %1854 = vmatpush1.msra.mxu0 0.0
      %1855 = vmatprep.subr.mxu0 0.0
      %1856 = vmatpush1.msra.mxu0 0.0
      %1857 = vmatprep.subr.mxu0 0.0
      %1858 = vmatpush1.msra.mxu0 0.0
      %1859 = vmatprep.subr.mxu0 0.0
      %1860 = vmatpush1.msra.mxu0 0.0
      %1861 = vmatprep.subr.mxu0 0.0
      %1862 = vmatpush1.msra.mxu0 0.0
      %1863 = vmatprep.subr.mxu0 0.0
      %1864 = vmatpush1.msra.mxu0 0.0
      %1865 = vmatprep.subr.mxu0 0.0
      %1866 = vmatpush1.msra.mxu0 0.0
      %1867 = vmatprep.subr.mxu0 0.0
      %1868 = vmatpush1.msra.mxu0 0.0
      %1869 = vmatprep.subr.mxu0 0.0
      %1870 = vmatpush1.msra.mxu0 0.0
      %1871 = vmatprep.subr.mxu0 0.0
      %1872 = vmatpush1.msra.mxu0 0.0
      %1873 = vmatprep.subr.mxu0 0.0
      %1874 = vmatpush1.msra.mxu0 0.0
      %1875 = vmatprep.subr.mxu0 0.0
      %1876 = vmatpush1.msra.mxu0 0.0
      %1877 = vmatprep.subr.mxu0 0.0
      %1878 = vmatpush1.msra.mxu0 0.0
      %1879 = vmatprep.subr.mxu0 0.0
      %1880 = vmatpush1.msra.mxu0 0.0
      %1881 = vmatprep.subr.mxu0 0.0
      %1882 = vmatpush1.msra.mxu0 0.0
      %1883 = vmatprep.subr.mxu0 0.0
      %1884 = vmatpush1.msra.mxu0 0.0
      %1885 = vmatprep.subr.mxu0 0.0
      %1886 = vmatpush1.msra.mxu0 0.0
      %1887 = vmatprep.subr.mxu0 0.0
      %1888 = vmatpush1.msra.mxu0 0.0
      %1889 = vmatprep.subr.mxu0 0.0
      %1890 = vmatpush1.msra.mxu0 0.0
      %1891 = vmatprep.subr.mxu0 0.0
      %1892 = vmatpush1.msra.mxu0 0.0
      %1893 = vmatprep.subr.mxu0 0.0
      %1894 = vmatpush1.msra.mxu0 0.0
      %1895 = vmatprep.subr.mxu0 0.0
      %1896 = vmatpush1.msra.mxu0 0.0
      %1897 = vmatprep.subr.mxu0 0.0
      %1898 = vmatpush1.msra.mxu0 0.0
      %1899 = vmatprep.subr.mxu0 0.0
      %1900 = vmatpush1.msra.mxu0 0.0
      %1901 = vmatprep.subr.mxu0 0.0
      %1902 = vmatpush1.msra.mxu0 0.0
      %1903 = vmatprep.subr.mxu0 0.0
      %1904 = vmatpush1.msra.mxu0 0.0
      %1905 = vmatprep.subr.mxu0 0.0
      %1906 = vmatpush1.msra.mxu0 0.0
      %1907 = vmatprep.subr.mxu0 0.0
      %1908 = vmatpush1.msra.mxu0 0.0
      %1909 = vmatprep.subr.mxu0 0.0
      %1910 = vmatpush1.msra.mxu0 0.0
      %1911 = vmatprep.subr.mxu0 0.0
      %1912 = vmatpush1.msra.mxu0 0.0
      %1913 = vmatprep.subr.mxu0 0.0
      %1914 = vmatpush1.msra.mxu0 0.0
      %1915 = vmatprep.mubr.f32.mxu0 0.0
      %1916 = vmatmul.mubr.f32.gmra.mrb[0].mxu0 %v1660
      %v1917 = vpop.f32.mrb[0].mxu0
      %v1918 = vadd.f32 %v1656, %v1917
      %v1919 = vpop.f32.mrb[0].mxu0
      %1920 = vmatprep.mubr.f32.mxu0 0.0
      %1921 = vmatmul.mubr.f32.gmra.mrb[0].mxu0 %v1663
      %v1922 = vpop.f32.mrb[0].mxu0
      %v1923 = vadd.f32 %v1656, %v1922
      %v1924 = vpop.f32.mrb[0].mxu0
      %1925 = vmatprep.mubr.f32.mxu0 0.0
      %1926 = vmatmul.mubr.f32.gmra.mrb[0].mxu0 %v1666
      %v1927 = vpop.f32.mrb[0].mxu0
      %v1928 = vadd.f32 %v1656, %v1927
      %v1929 = vpop.f32.mrb[0].mxu0
      %1930 = vmatprep.mubr.f32.mxu0 0.0
      %1931 = vmatmul.mubr.f32.gmra.mrb[0].mxu0 %v1669
      %v1932 = vpop.f32.mrb[0].mxu0
      %v1933 = vadd.f32 %v1656, %v1932
      %v1934 = vpop.f32.mrb[0].mxu0
      %1935 = vmatprep.mubr.f32.mxu0 0.0
      %1936 = vmatmul.mubr.f32.gmra.mrb[0].mxu0 %v1672
      %v1937 = vpop.f32.mrb[0].mxu0
      %v1938 = vadd.f32 %v1656, %v1937
      %v1939 = vpop.f32.mrb[0].mxu0
      %1940 = vmatprep.mubr.f32.mxu0 0.0
      %1941 = vmatmul.mubr.f32.gmra.mrb[0].mxu0 %v1675
      %v1942 = vpop.f32.mrb[0].mxu0
      %v1943 = vadd.f32 %v1656, %v1942
      %v1944 = vpop.f32.mrb[0].mxu0
      %1945 = vmatprep.mubr.f32.mxu0 0.0
      %1946 = vmatmul.mubr.f32.gmra.mrb[0].mxu0 %v1678
      %v1947 = vpop.f32.mrb[0].mxu0
      %v1948 = vadd.f32 %v1656, %v1947
      %v1949 = vpop.f32.mrb[0].mxu0
      %1950 = vmatprep.mubr.f32.mxu0 0.0
      %1951 = vmatmul.mubr.f32.gmra.mrb[0].mxu0 %v1681
      %v1952 = vpop.f32.mrb[0].mxu0
      %v1953 = vadd.f32 %v1656, %v1952
      %v1954 = vpop.f32.mrb[0].mxu0
      %1955 = vmatprep.mubr.f32.mxu0 0.0
      %1956 = vmatmul.mubr.f32.gmra.mrb[0].mxu0 %v1684
      %v1957 = vpop.f32.mrb[0].mxu0
      %v1958 = vadd.f32 %v1656, %v1957
      %v1959 = vpop.f32.mrb[0].mxu0
      %1960 = vmatprep.mubr.f32.mxu0 0.0
      %1961 = vmatmul.mubr.f32.gmra.mrb[0].mxu0 %v1687
      %v1962 = vpop.f32.mrb[0].mxu0
      %v1963 = vadd.f32 %v1656, %v1962
      %v1964 = vpop.f32.mrb[0].mxu0
      %1965 = vmatprep.mubr.f32.mxu0 0.0
      %1966 = vmatmul.mubr.f32.gmra.mrb[0].mxu0 %v1690
      %v1967 = vpop.f32.mrb[0].mxu0
      %v1968 = vadd.f32 %v1656, %v1967
      %v1969 = vpop.f32.mrb[0].mxu0
      %1970 = vmatprep.mubr.f32.mxu0 0.0
      %1971 = vmatmul.mubr.f32.gmra.mrb[0].mxu0 %v1693
      %v1972 = vpop.f32.mrb[0].mxu0
      %v1973 = vadd.f32 %v1656, %v1972
      %v1974 = vpop.f32.mrb[0].mxu0
      %1975 = vmatprep.mubr.f32.mxu0 0.0
      %1976 = vmatmul.mubr.f32.gmra.mrb[0].mxu0 %v1696
      %v1977 = vpop.f32.mrb[0].mxu0
      %v1978 = vadd.f32 %v1656, %v1977
      %v1979 = vpop.f32.mrb[0].mxu0
      %1980 = vmatprep.mubr.f32.mxu0 0.0
      %1981 = vmatmul.mubr.f32.gmra.mrb[0].mxu0 %v1699
      %v1982 = vpop.f32.mrb[0].mxu0
      %v1983 = vadd.f32 %v1656, %v1982
      %v1984 = vpop.f32.mrb[0].mxu0
      %1985 = vmatprep.mubr.f32.mxu0 0.0
      %1986 = vmatmul.mubr.f32.gmra.mrb[0].mxu0 %v1702
      %v1987 = vpop.f32.mrb[0].mxu0
      %v1988 = vadd.f32 %v1656, %v1987
      %v1989 = vpop.f32.mrb[0].mxu0
      %1990 = vmatprep.mubr.f32.mxu0 0.0
      %1991 = vmatmul.mubr.f32.gmra.mrb[0].mxu0 %v1705
      %v1992 = vpop.f32.mrb[0].mxu0
      %v1993 = vadd.f32 %v1656, %v1992
      %v1994 = vpop.f32.mrb[0].mxu0
      %1995 = vmatprep.mubr.f32.mxu0 0.0
      %1996 = vmatmul.mubr.f32.gmra.mrb[0].mxu0 %v1708
      %v1997 = vpop.f32.mrb[0].mxu0
      %v1998 = vadd.f32 %v1656, %v1997
      %v1999 = vpop.f32.mrb[0].mxu0
      %2000 = vmatprep.mubr.f32.mxu0 0.0
      %2001 = vmatmul.mubr.f32.gmra.mrb[0].mxu0 %v1711
      %v2002 = vpop.f32.mrb[0].mxu0
      %v2003 = vadd.f32 %v1656, %v2002
      %v2004 = vpop.f32.mrb[0].mxu0
      %2005 = vmatprep.mubr.f32.mxu0 0.0
      %2006 = vmatmul.mubr.f32.gmra.mrb[0].mxu0 %v1714
      %v2007 = vpop.f32.mrb[0].mxu0
      %v2008 = vadd.f32 %v1656, %v2007
      %v2009 = vpop.f32.mrb[0].mxu0
      %2010 = vmatprep.mubr.f32.mxu0 0.0
      %2011 = vmatmul.mubr.f32.gmra.mrb[0].mxu0 %v1717
      %v2012 = vpop.f32.mrb[0].mxu0
      %v2013 = vadd.f32 %v1656, %v2012
      %v2014 = vpop.f32.mrb[0].mxu0
      %2015 = vmatprep.mubr.f32.mxu0 0.0
      %2016 = vmatmul.mubr.f32.gmra.mrb[0].mxu0 %v1720
      %v2017 = vpop.f32.mrb[0].mxu0
      %v2018 = vadd.f32 %v1656, %v2017
      %v2019 = vpop.f32.mrb[0].mxu0
      %2020 = vmatprep.mubr.f32.mxu0 0.0
      %2021 = vmatmul.mubr.f32.gmra.mrb[0].mxu0 %v1723
      %v2022 = vpop.f32.mrb[0].mxu0
      %v2023 = vadd.f32 %v1656, %v2022
      %v2024 = vpop.f32.mrb[0].mxu0
      %2025 = vmatprep.mubr.f32.mxu0 0.0
      %2026 = vmatmul.mubr.f32.gmra.mrb[0].mxu0 %v1726
      %v2027 = vpop.f32.mrb[0].mxu0
      %v2028 = vadd.f32 %v1656, %v2027
      %v2029 = vpop.f32.mrb[0].mxu0
      %2030 = vmatprep.mubr.f32.mxu0 0.0
      %2031 = vmatmul.mubr.f32.gmra.mrb[0].mxu0 %v1729
      %v2032 = vpop.f32.mrb[0].mxu0
      %v2033 = vadd.f32 %v1656, %v2032
      %v2034 = vpop.f32.mrb[0].mxu0
      %2035 = vmatprep.mubr.f32.mxu0 0.0
      %2036 = vmatmul.mubr.f32.gmra.mrb[0].mxu0 %v1732
      %v2037 = vpop.f32.mrb[0].mxu0
      %v2038 = vadd.f32 %v1656, %v2037
      %v2039 = vpop.f32.mrb[0].mxu0
      %2040 = vmatprep.mubr.f32.mxu0 0.0
      %2041 = vmatmul.mubr.f32.gmra.mrb[0].mxu0 %v1735
      %v2042 = vpop.f32.mrb[0].mxu0
      %v2043 = vadd.f32 %v1656, %v2042
      %v2044 = vpop.f32.mrb[0].mxu0
      %2045 = vmatprep.mubr.f32.mxu0 0.0
      %2046 = vmatmul.mubr.f32.gmra.mrb[0].mxu0 %v1738
      %v2047 = vpop.f32.mrb[0].mxu0
      %v2048 = vadd.f32 %v1656, %v2047
      %v2049 = vpop.f32.mrb[0].mxu0
      %2050 = vmatprep.mubr.f32.mxu0 0.0
      %2051 = vmatmul.mubr.f32.gmra.mrb[0].mxu0 %v1741
      %v2052 = vpop.f32.mrb[0].mxu0
      %v2053 = vadd.f32 %v1656, %v2052
      %v2054 = vpop.f32.mrb[0].mxu0
      %2055 = vmatprep.mubr.f32.mxu0 0.0
      %2056 = vmatmul.mubr.f32.gmra.mrb[0].mxu0 %v1744
      %v2057 = vpop.f32.mrb[0].mxu0
      %v2058 = vadd.f32 %v1656, %v2057
      %v2059 = vpop.f32.mrb[0].mxu0
      %2060 = vmatprep.mubr.f32.mxu0 0.0
      %2061 = vmatmul.mubr.f32.gmra.mrb[0].mxu0 %v1747
      %v2062 = vpop.f32.mrb[0].mxu0
      %v2063 = vadd.f32 %v1656, %v2062
      %v2064 = vpop.f32.mrb[0].mxu0
      %2065 = vmatprep.mubr.f32.mxu0 0.0
      %2066 = vmatmul.mubr.f32.gmra.mrb[0].mxu0 %v1750
      %v2067 = vpop.f32.mrb[0].mxu0
      %v2068 = vadd.f32 %v1656, %v2067
      %v2069 = vpop.f32.mrb[0].mxu0
      %2070 = vmatprep.mubr.f32.mxu0 0.0
      %2071 = vmatmul.mubr.f32.gmra.mrb[0].mxu0 %v1753
      %v2072 = vpop.f32.mrb[0].mxu0
      %v2073 = vadd.f32 %v1656, %v2072
      %v2074 = vpop.f32.mrb[0].mxu0
      %2075 = vmatprep.mubr.f32.mxu0 0.0
      %2076 = vmatmul.mubr.f32.gmra.mrb[0].mxu0 %v1756
      %v2077 = vpop.f32.mrb[0].mxu0
      %v2078 = vadd.f32 %v1656, %v2077
      %v2079 = vpop.f32.mrb[0].mxu0
      %2080 = vmatprep.mubr.f32.mxu0 0.0
      %2081 = vmatmul.mubr.f32.gmra.mrb[0].mxu0 %v1759
      %v2082 = vpop.f32.mrb[0].mxu0
      %v2083 = vadd.f32 %v1656, %v2082
      %v2084 = vpop.f32.mrb[0].mxu0
      %2085 = vmatprep.mubr.f32.mxu0 0.0
      %2086 = vmatmul.mubr.f32.gmra.mrb[0].mxu0 %v1762
      %v2087 = vpop.f32.mrb[0].mxu0
      %v2088 = vadd.f32 %v1656, %v2087
      %v2089 = vpop.f32.mrb[0].mxu0
      %2090 = vmatprep.mubr.f32.mxu0 0.0
      %2091 = vmatmul.mubr.f32.gmra.mrb[0].mxu0 %v1765
      %v2092 = vpop.f32.mrb[0].mxu0
      %v2093 = vadd.f32 %v1656, %v2092
      %v2094 = vpop.f32.mrb[0].mxu0
      %2095 = vmatprep.mubr.f32.mxu0 0.0
      %2096 = vmatmul.mubr.f32.gmra.mrb[0].mxu0 %v1768
      %v2097 = vpop.f32.mrb[0].mxu0
      %v2098 = vadd.f32 %v1656, %v2097
      %v2099 = vpop.f32.mrb[0].mxu0
      %2100 = vmatprep.mubr.f32.mxu0 0.0
      %2101 = vmatmul.mubr.f32.gmra.mrb[0].mxu0 %v1771
      %v2102 = vpop.f32.mrb[0].mxu0
      %v2103 = vadd.f32 %v1656, %v2102
      %v2104 = vpop.f32.mrb[0].mxu0
      %2105 = vmatprep.mubr.f32.mxu0 0.0
      %2106 = vmatmul.mubr.f32.gmra.mrb[0].mxu0 %v1774
      %v2107 = vpop.f32.mrb[0].mxu0
      %v2108 = vadd.f32 %v1656, %v2107
      %v2109 = vpop.f32.mrb[0].mxu0
      %2110 = vmatprep.mubr.f32.mxu0 0.0
      %2111 = vmatmul.mubr.f32.gmra.mrb[0].mxu0 %v1777
      %v2112 = vpop.f32.mrb[0].mxu0
      %v2113 = vadd.f32 %v1656, %v2112
      %v2114 = vpop.f32.mrb[0].mxu0
      %2115 = vmatprep.mubr.f32.mxu0 0.0
      %2116 = vmatmul.mubr.f32.gmra.mrb[0].mxu0 %v1780
      %v2117 = vpop.f32.mrb[0].mxu0
      %v2118 = vadd.f32 %v1656, %v2117
      %v2119 = vpop.f32.mrb[0].mxu0
      %2120 = vmatprep.mubr.f32.mxu0 0.0
      %2121 = vmatmul.mubr.f32.gmra.mrb[0].mxu0 %v1783
      %v2122 = vpop.f32.mrb[0].mxu0
      %v2123 = vadd.f32 %v1656, %v2122
      %v2124 = vpop.f32.mrb[0].mxu0
      %2125 = vmatprep.mubr.f32.mxu0 0.0
      %2126 = vmatmul.mubr.f32.gmra.mrb[0].mxu0 %v1786
      %v2127 = vpop.f32.mrb[0].mxu0
      %v2128 = vadd.f32 %v1656, %v2127
      %v2129 = vpop.f32.mrb[0].mxu0
      %2130 = vmatprep.mubr.f32.mxu0 0.0
      %2131 = vmatmul.mubr.f32.gmra.mrb[0].mxu0 %v1789
      %v2132 = vpop.f32.mrb[0].mxu0
      %v2133 = vadd.f32 %v1656, %v2132
      %v2134 = vpop.f32.mrb[0].mxu0
      %2135 = vmatprep.mubr.f32.mxu0 0.0
      %2136 = vmatmul.mubr.f32.gmra.mrb[0].mxu0 %v1792
      %v2137 = vpop.f32.mrb[0].mxu0
      %v2138 = vadd.f32 %v1656, %v2137
      %v2139 = vpop.f32.mrb[0].mxu0
      %2140 = vmatprep.mubr.f32.mxu0 0.0
      %2141 = vmatmul.mubr.f32.gmra.mrb[0].mxu0 %v1795
      %v2142 = vpop.f32.mrb[0].mxu0
      %v2143 = vadd.f32 %v1656, %v2142
      %v2144 = vpop.f32.mrb[0].mxu0
      %2145 = vmatprep.mubr.f32.mxu0 0.0
      %2146 = vmatmul.mubr.f32.gmra.mrb[0].mxu0 %v1798
      %v2147 = vpop.f32.mrb[0].mxu0
      %v2148 = vadd.f32 %v1656, %v2147
      %v2149 = vpop.f32.mrb[0].mxu0
      %2150 = vmatprep.mubr.f32.mxu0 0.0
      %2151 = vmatmul.mubr.f32.gmra.mrb[0].mxu0 %v1801
      %v2152 = vpop.f32.mrb[0].mxu0
      %v2153 = vadd.f32 %v1656, %v2152
      %v2154 = vpop.f32.mrb[0].mxu0
      %2155 = vmatprep.mubr.f32.mxu0 0.0
      %2156 = vmatmul.mubr.f32.gmra.mrb[0].mxu0 %v1804
      %v2157 = vpop.f32.mrb[0].mxu0
      %v2158 = vadd.f32 %v1656, %v2157
      %v2159 = vpop.f32.mrb[0].mxu0
      %2160 = vmatprep.mubr.f32.mxu0 0.0
      %2161 = vmatmul.mubr.f32.gmra.mrb[0].mxu0 %v1807
      %v2162 = vpop.f32.mrb[0].mxu0
      %v2163 = vadd.f32 %v1656, %v2162
      %v2164 = vpop.f32.mrb[0].mxu0
      %2165 = vmatprep.mubr.f32.mxu0 0.0
      %2166 = vmatmul.mubr.f32.gmra.mrb[0].mxu0 %v1810
      %v2167 = vpop.f32.mrb[0].mxu0
      %v2168 = vadd.f32 %v1656, %v2167
      %v2169 = vpop.f32.mrb[0].mxu0
      %2170 = vmatprep.mubr.f32.mxu0 0.0
      %2171 = vmatmul.mubr.f32.gmra.mrb[0].mxu0 %v1813
      %v2172 = vpop.f32.mrb[0].mxu0
      %v2173 = vadd.f32 %v1656, %v2172
      %v2174 = vpop.f32.mrb[0].mxu0
      %2175 = vmatprep.mubr.f32.mxu0 0.0
      %2176 = vmatmul.mubr.f32.gmra.mrb[0].mxu0 %v1816
      %v2177 = vpop.f32.mrb[0].mxu0
      %v2178 = vadd.f32 %v1656, %v2177
      %v2179 = vpop.f32.mrb[0].mxu0
      %2180 = vmatprep.mubr.f32.mxu0 0.0
      %2181 = vmatmul.mubr.f32.gmra.mrb[0].mxu0 %v1819
      %v2182 = vpop.f32.mrb[0].mxu0
      %v2183 = vadd.f32 %v1656, %v2182
      %v2184 = vpop.f32.mrb[0].mxu0
      %2185 = vmatprep.mubr.f32.mxu0 0.0
      %2186 = vmatmul.mubr.f32.gmra.mrb[0].mxu0 %v1822
      %v2187 = vpop.f32.mrb[0].mxu0
      %v2188 = vadd.f32 %v1656, %v2187
      %v2189 = vpop.f32.mrb[0].mxu0
      %2190 = vmatprep.mubr.f32.mxu0 0.0
      %2191 = vmatmul.mubr.f32.gmra.mrb[0].mxu0 %v1825
      %v2192 = vpop.f32.mrb[0].mxu0
      %v2193 = vadd.f32 %v1656, %v2192
      %v2194 = vpop.f32.mrb[0].mxu0
      %2195 = vmatprep.mubr.f32.mxu0 0.0
      %2196 = vmatmul.mubr.f32.gmra.mrb[0].mxu0 %v1828
      %v2197 = vpop.f32.mrb[0].mxu0
      %v2198 = vadd.f32 %v1656, %v2197
      %v2199 = vpop.f32.mrb[0].mxu0
      %2200 = vmatprep.mubr.f32.mxu0 0.0
      %2201 = vmatmul.mubr.f32.gmra.mrb[0].mxu0 %v1831
      %v2202 = vpop.f32.mrb[0].mxu0
      %v2203 = vadd.f32 %v1656, %v2202
      %v2204 = vpop.f32.mrb[0].mxu0
      %2205 = vmatprep.mubr.f32.mxu0 0.0
      %2206 = vmatmul.mubr.f32.gmra.mrb[0].mxu0 %v1834
      %v2207 = vpop.f32.mrb[0].mxu0
      %v2208 = vadd.f32 %v1656, %v2207
      %v2209 = vpop.f32.mrb[0].mxu0
      %2210 = vmatprep.mubr.f32.mxu0 0.0
      %2211 = vmatmul.mubr.f32.gmra.mrb[0].mxu0 %v1837
      %v2212 = vpop.f32.mrb[0].mxu0
      %v2213 = vadd.f32 %v1656, %v2212
      %v2214 = vpop.f32.mrb[0].mxu0
      %2215 = vmatprep.mubr.f32.mxu0 0.0
      %2216 = vmatmul.mubr.f32.gmra.mrb[0].mxu0 %v1840
      %v2217 = vpop.f32.mrb[0].mxu0
      %v2218 = vadd.f32 %v1656, %v2217
      %v2219 = vpop.f32.mrb[0].mxu0
      %2220 = vmatprep.mubr.f32.mxu0 0.0
      %2221 = vmatmul.mubr.f32.gmra.mrb[0].mxu0 %v1843
      %v2222 = vpop.f32.mrb[0].mxu0
      %v2223 = vadd.f32 %v1656, %v2222
      %v2224 = vpop.f32.mrb[0].mxu0
      %2225 = vmatprep.mubr.f32.mxu0 0.0
      %2226 = vmatmul.mubr.f32.gmra.mrb[0].mxu0 %v1846
      %v2227 = vpop.f32.mrb[0].mxu0
      %v2228 = vadd.f32 %v1656, %v2227
      %v2229 = vpop.f32.mrb[0].mxu0
      %2230 = vmatprep.mubr.f32.mxu0 0.0
      %2231 = vmatmul.mubr.f32.gmra.mrb[0].mxu0 %v1849
      %v2232 = vpop.f32.mrb[0].mxu0
      %v2233 = vadd.f32 %v1656, %v2232
      %v2234 = vpop.f32.mrb[0].mxu0
      %2235 = vdwg.mxu0
      %2236 = vst.msk [vmem:[%s280] sm:$0xff] %vm1658, %v1918
      %2237 = vst.msk [vmem:[%s280 + $0x8] sm:$0xff] %vm1658, %v1923
      %2238 = vst.msk [vmem:[%s280 + $0x10] sm:$0xff] %vm1658, %v1928
      %2239 = vst.msk [vmem:[%s280 + $0x18] sm:$0xff] %vm1658, %v1933
      %2240 = vst.msk [vmem:[%s280 + $0x20] sm:$0xff] %vm1658, %v1938
      %2241 = vst.msk [vmem:[%s280 + $0x28] sm:$0xff] %vm1658, %v1943
      %2242 = vst.msk [vmem:[%s280 + $0x30] sm:$0xff] %vm1658, %v1948
      %2243 = vst.msk [vmem:[%s280 + $0x38] sm:$0xff] %vm1658, %v1953
      %2244 = vst.msk [vmem:[%s280 + $0x40] sm:$0xff] %vm1658, %v1958
      %2245 = vst.msk [vmem:[%s280 + $0x48] sm:$0xff] %vm1658, %v1963
      %2246 = vst.msk [vmem:[%s280 + $0x50] sm:$0xff] %vm1658, %v1968
      %2247 = vst.msk [vmem:[%s280 + $0x58] sm:$0xff] %vm1658, %v1973
      %2248 = vst.msk [vmem:[%s280 + $0x60] sm:$0xff] %vm1658, %v1978
      %2249 = vst.msk [vmem:[%s280 + $0x68] sm:$0xff] %vm1658, %v1983
      %2250 = vst.msk [vmem:[%s280 + $0x70] sm:$0xff] %vm1658, %v1988
      %2251 = vst.msk [vmem:[%s280 + $0x78] sm:$0xff] %vm1658, %v1993
      %2252 = vst.msk [vmem:[%s280 + $0x80] sm:$0xff] %vm1658, %v1998
      %2253 = vst.msk [vmem:[%s280 + $0x88] sm:$0xff] %vm1658, %v2003
      %2254 = vst.msk [vmem:[%s280 + $0x90] sm:$0xff] %vm1658, %v2008
      %2255 = vst.msk [vmem:[%s280 + $0x98] sm:$0xff] %vm1658, %v2013
      %2256 = vst.msk [vmem:[%s280 + $0xa0] sm:$0xff] %vm1658, %v2018
      %2257 = vst.msk [vmem:[%s280 + $0xa8] sm:$0xff] %vm1658, %v2023
      %2258 = vst.msk [vmem:[%s280 + $0xb0] sm:$0xff] %vm1658, %v2028
      %2259 = vst.msk [vmem:[%s280 + $0xb8] sm:$0xff] %vm1658, %v2033
      %2260 = vst.msk [vmem:[%s280 + $0xc0] sm:$0xff] %vm1658, %v2038
      %2261 = vst.msk [vmem:[%s280 + $0xc8] sm:$0xff] %vm1658, %v2043
      %2262 = vst.msk [vmem:[%s280 + $0xd0] sm:$0xff] %vm1658, %v2048
      %2263 = vst.msk [vmem:[%s280 + $0xd8] sm:$0xff] %vm1658, %v2053
      %2264 = vst.msk [vmem:[%s280 + $0xe0] sm:$0xff] %vm1658, %v2058
      %2265 = vst.msk [vmem:[%s280 + $0xe8] sm:$0xff] %vm1658, %v2063
      %2266 = vst.msk [vmem:[%s280 + $0xf0] sm:$0xff] %vm1658, %v2068
      %2267 = vst.msk [vmem:[%s280 + $0xf8] sm:$0xff] %vm1658, %v2073
      %2268 = vst.msk [vmem:[%s280 + $0x100] sm:$0xff] %vm1658, %v2078
      %2269 = vst.msk [vmem:[%s280 + $0x108] sm:$0xff] %vm1658, %v2083
      %2270 = vst.msk [vmem:[%s280 + $0x110] sm:$0xff] %vm1658, %v2088
      %2271 = vst.msk [vmem:[%s280 + $0x118] sm:$0xff] %vm1658, %v2093
      %2272 = vst.msk [vmem:[%s280 + $0x120] sm:$0xff] %vm1658, %v2098
      %2273 = vst.msk [vmem:[%s280 + $0x128] sm:$0xff] %vm1658, %v2103
      %2274 = vst.msk [vmem:[%s280 + $0x130] sm:$0xff] %vm1658, %v2108
      %2275 = vst.msk [vmem:[%s280 + $0x138] sm:$0xff] %vm1658, %v2113
      %2276 = vst.msk [vmem:[%s280 + $0x140] sm:$0xff] %vm1658, %v2118
      %2277 = vst.msk [vmem:[%s280 + $0x148] sm:$0xff] %vm1658, %v2123
      %2278 = vst.msk [vmem:[%s280 + $0x150] sm:$0xff] %vm1658, %v2128
      %2279 = vst.msk [vmem:[%s280 + $0x158] sm:$0xff] %vm1658, %v2133
      %2280 = vst.msk [vmem:[%s280 + $0x160] sm:$0xff] %vm1658, %v2138
      %2281 = vst.msk [vmem:[%s280 + $0x168] sm:$0xff] %vm1658, %v2143
      %2282 = vst.msk [vmem:[%s280 + $0x170] sm:$0xff] %vm1658, %v2148
      %2283 = vst.msk [vmem:[%s280 + $0x178] sm:$0xff] %vm1658, %v2153
      %2284 = vst.msk [vmem:[%s280 + $0x180] sm:$0xff] %vm1658, %v2158
      %2285 = vst.msk [vmem:[%s280 + $0x188] sm:$0xff] %vm1658, %v2163
      %2286 = vst.msk [vmem:[%s280 + $0x190] sm:$0xff] %vm1658, %v2168
      %2287 = vst.msk [vmem:[%s280 + $0x198] sm:$0xff] %vm1658, %v2173
      %2288 = vst.msk [vmem:[%s280 + $0x1a0] sm:$0xff] %vm1658, %v2178
      %2289 = vst.msk [vmem:[%s280 + $0x1a8] sm:$0xff] %vm1658, %v2183
      %2290 = vst.msk [vmem:[%s280 + $0x1b0] sm:$0xff] %vm1658, %v2188
      %2291 = vst.msk [vmem:[%s280 + $0x1b8] sm:$0xff] %vm1658, %v2193
      %2292 = vst.msk [vmem:[%s280 + $0x1c0] sm:$0xff] %vm1658, %v2198
      %2293 = vst.msk [vmem:[%s280 + $0x1c8] sm:$0xff] %vm1658, %v2203
      %2294 = vst.msk [vmem:[%s280 + $0x1d0] sm:$0xff] %vm1658, %v2208
      %2295 = vst.msk [vmem:[%s280 + $0x1d8] sm:$0xff] %vm1658, %v2213
      %2296 = vst.msk [vmem:[%s280 + $0x1e0] sm:$0xff] %vm1658, %v2218
      %2297 = vst.msk [vmem:[%s280 + $0x1e8] sm:$0xff] %vm1658, %v2223
      %2298 = vst.msk [vmem:[%s280 + $0x1f0] sm:$0xff] %vm1658, %v2228
      %2299 = vst.msk [vmem:[%s280 + $0x1f8] sm:$0xff] %vm1658, %v2233
      %s2300 = smul.u32 64, %s18
      %p2301 = scmp.lt.s32.totalorder %s2300, 127
      %s2302 = scalar_select %p2301, %s2300, 127
      %s2303 = smul.addr %s2302, 8
      %s2304 = scalar_lea.vmem %s7, %s2303
      // Predicated region
      $region49: #{tpu_custom_call.1} parent=47 // pred_check
        %p2305 = pneg %p188
      $region50: #{tpu_custom_call.1} parent=47 // pred_check_branch
        %2307 = sbr.rel (%p2305) target = $region52
      $region51: #{tpu_custom_call.1} parent=47 // pred_region
        %s2308 = smul.u32 64, %s18
      $region52: #{tpu_custom_call.1} parent=47 // pred_fallthru
        _
    $region48: #{tpu_custom_call.1} parent=5 // pred_fallthru
      _
    %p2309 = scmp.le.s32.totalorder 2, %s13
    // Predicated region
    $region53: #{tpu_custom_call.1} parent=5 // pred_check
      %p2310 = pneg %p2309
    $region54: #{tpu_custom_call.1} parent=5 // pred_check_branch
      %2312 = sbr.rel (%p2310) target = $region56
    $region55: #{tpu_custom_call.1} parent=5 // pred_region
      %s2313 = ssub.s32 %s13, 2
      // Predicated region
      $region57: #{tpu_custom_call.1} parent=55 // pred_check
        %p2314 = pneg %p194
      $region58: #{tpu_custom_call.1} parent=55 // pred_check_branch
        %2316 = sbr.rel (%p2314) target = $region60
      $region59: #{tpu_custom_call.1} parent=55 // pred_region
        %s2317 = smul.u32 64, %s19
        %p2318 = scmp.lt.s32.totalorder %s2317, 127
        %s2319 = scalar_select %p2318, %s2317, 127
        %s2320 = smul.addr %s2319, 8
        %s2321 = scalar_lea.vmem %s7, %s2320
      $region60: #{tpu_custom_call.1} parent=55 // pred_fallthru
        _
    $region56: #{tpu_custom_call.1} parent=5 // pred_fallthru
      _
  $region6: #{tpu_custom_call.1} parent=0 // loop_footer
    %s17 = sadd.s32 1, %s13
  $region7: #{tpu_custom_call.1} parent=0 // loop_footer_branch
    %12 = sbr.rel target = $region3
  $region8: #{tpu_custom_call.1} parent=0 // loop_exit
    _

</llo_original>
